<compile_context>
chip_gen: v6e
topology: v6e:2x2x1
jax: 0.10.0
libtpu: 0.0.40
codegen_flags: <defaults>
</compile_context>

<pallas_src>
import functools

import jax
import jax.numpy as jnp
from jax import lax
from jax.experimental import pallas as pl
from jax.experimental.pallas import tpu as pltpu


def _round_up(x, m):
    return ((x + m - 1) // m) * m


# ---------------------------------------------------------------------------
# Fused kernel (one batch element per grid step)
# ---------------------------------------------------------------------------
def _fused_dp_kernel(*refs, n_layers, kernel_size, pad_l, pad_r, align, eps):
    """Ref layout (positional):
       inputs : x(1,T,Cin0) f32, mask_col(1,T,1) f32, mask_row(1,1,T) f32,
                [w(K,Cin_i,C) cdt, b(1,C) f32, gamma(1,C) f32, beta(1,C) f32]*n_layers,
                w_lin(1,C) cdt, b_lin(1,1) f32
       outputs: o(1,1,T) f32
       scratch: xpad(align+T+pad_r, Cin0) cdt, [hpad(align+T+pad_r, C) cdt if n_layers>1]
    """
    x_ref, mcol_ref, mrow_ref = refs[0], refs[1], refs[2]
    pos = 3
    conv_refs = []
    for _ in range(n_layers):
        conv_refs.append(refs[pos:pos + 4])
        pos += 4
    w_lin_ref, b_lin_ref = refs[pos], refs[pos + 1]
    pos += 2
    o_ref = refs[pos]
    pos += 1
    xpad_ref = refs[pos]
    pos += 1
    hpad_ref = refs[pos] if n_layers > 1 else None

    f32 = jnp.float32
    T = o_ref.shape[-1]
    K = kernel_size
    n_chans = conv_refs[0][0].shape[2]
    start = align - pad_l            # static row of the first conv tap

    # Mask tiles (tiny, DMA'd once per step). Broadcast hoisted out of the
    # unrolled layer loop (JAX does not CSE broadcast_in_dim).
    nonpad_col = mcol_ref[0]                                  # (T, 1) f32
    nonpad_bc = jnp.broadcast_to(nonpad_col, (T, n_chans))    # (T, C) f32
    nonpad_row = mrow_ref[0]                                  # (1, T) f32, lane-dense

    # --- ConstantPad1d: zero borders of the padded scratch buffers. Data lives
    # at rows [align, align+T) so the big per-layer store is sublane/packing
    # aligned; the left zero border covers [align-pad_l, align), the right one
    # [align+T, align+T+pad_r). ---
    cin0 = xpad_ref.shape[1]
    if align:
        xpad_ref[0:align, :] = jnp.zeros((align, cin0), xpad_ref.dtype)
    if pad_r:
        xpad_ref[align + T:align + T + pad_r, :] = jnp.zeros((pad_r, cin0), xpad_ref.dtype)
    xpad_ref[align:align + T, :] = x_ref[0].astype(xpad_ref.dtype)

    if hpad_ref is not None:
        if align:
            hpad_ref[0:align, :] = jnp.zeros((align, n_chans), hpad_ref.dtype)
        if pad_r:
            hpad_ref[align + T:align + T + pad_r, :] = jnp.zeros((pad_r, n_chans), hpad_ref.dtype)

    h_last = None
    for i, (w_ref, b_ref, g_ref, be_ref) in enumerate(conv_refs):
        src_ref = xpad_ref if i == 0 else hpad_ref

        # Conv1d as K accumulating MXU matmuls over the time-shifted windows
        # (no (T, K*Cin) im2col temporary), f32 accumulation.
        y = jnp.dot(src_ref[start:start + T, :], w_ref[0],
                    preferred_element_type=f32)
        for k in range(1, K):
            y = y + jnp.dot(src_ref[start + k:start + k + T, :], w_ref[k],
                            preferred_element_type=f32)
        y = y + b_ref[...]                         # conv bias (f32)
        y = jnp.maximum(y, 0.0)                    # ReLU

        # LayerNorm over channels (torch LayerNorm(nout, dim=1), eps=1e-12),
        # two-pass statistics in f32 (avoids E[x^2]-mean^2 cancellation; the
        # centered value is needed anyway so the cost is identical).
        inv_c = 1.0 / n_chans
        mean = jnp.sum(y, axis=-1, keepdims=True) * inv_c
        centered = y - mean
        var = jnp.sum(centered * centered, axis=-1, keepdims=True) * inv_c
        y = centered * lax.rsqrt(var + eps)
        y = y * g_ref[...] + be_ref[...]

        # Dropout = identity (eval mode). Mask after every conv block (module spec).
        y = y * nonpad_bc

        if i < n_layers - 1:
            # Single cast to compute dtype at the aligned store; becomes the
            # padded input of the next conv (borders already zero).
            hpad_ref[align:align + T, :] = y.astype(hpad_ref.dtype)
        else:
            h_last = y

    # --- final Linear(n_chans -> 1), lane-dense (1, T) row per batch element.
    # Last-dim x last-dim contraction = MXU transposed-RHS path (as in q @ k.T),
    # so the (T, C) activation is NOT transposed through the XLU. ---
    out_row = lax.dot_general(
        w_lin_ref[...], h_last.astype(w_lin_ref.dtype),
        dimension_numbers=(((1,), (1,)), ((), ())),
        preferred_element_type=f32)                            # (1, T)
    out_row = out_row + b_lin_ref[...]
    out_row = out_row * nonpad_row                             # final mask
    o_ref[...] = out_row.reshape(o_ref.shape).astype(o_ref.dtype)


# ---------------------------------------------------------------------------
# Wrapper
# ---------------------------------------------------------------------------
def _full_block(arr):
    # Whole (small) parameter array, same block every grid step.
    # NOTE: index_map is constant so the params are fetched once; the default
    # double-buffer wastes a little VMEM (pl.Buffered(1) would reclaim it) but is
    # kept for portability across jax versions.
    nd = arr.ndim
    return pl.BlockSpec(arr.shape, lambda b, _nd=nd: (0,) * _nd)


@functools.partial(jax.jit, static_argnames=("kernel_size", "padding", "compute_dtype"))
def duration_predictor_forward(params, xs, x_masks=None, *, kernel_size=3,
                               padding="SAME", compute_dtype=jnp.bfloat16):
    """xs: (B, T, idim) f32; x_masks: (B, T) (1 = padded) or None.
    Returns (B, T) log-domain durations (dur_loss='mse' path)."""
    B, T, idim = xs.shape
    n_layers = len(params["conv"])
    n_chans = params["conv"][0]["w"].shape[-1]
    K = kernel_size
    if padding == "SAME":
        assert K % 2 == 1, "SAME padding requires odd kernel_size"
        pad_l = pad_r = (K - 1) // 2
    else:  # 'LEFT' (causal)
        pad_l, pad_r = K - 1, 0
    # Sublane/packing-aligned left border (16 rows covers bf16 2-row packing and
    # is also a multiple of 8 for f32): the (T, C) activation store each layer is
    # then an unmasked, aligned vst.
    align = _round_up(pad_l, 16) if pad_l else 0
    t_pad = align + T + pad_r

    if x_masks is None:
        nonpad = jnp.ones((B, T), jnp.float32)
    else:
        nonpad = 1.0 - x_masks.astype(jnp.float32)
    mask_col = nonpad[:, :, None]     # (B, T, 1): per-row mask for (T, C) activations
    mask_row = nonpad[:, None, :]     # (B, 1, T): lane-dense mask for the output row

    # Pre-cast the matmul weights to compute_dtype in the wrapper: halves their
    # DMA bytes / resident VMEM and removes a per-grid-step in-kernel cast.
    flat_params = []
    for layer in params["conv"]:
        flat_params += [layer["w"].astype(compute_dtype), layer["b"],
                        layer["gamma"], layer["beta"]]
    flat_params += [params["linear_w"].astype(compute_dtype), params["linear_b"]]

    in_specs = [
        pl.BlockSpec((1, T, idim), lambda b: (b, 0, 0)),   # xs
        pl.BlockSpec((1, T, 1), lambda b: (b, 0, 0)),      # mask (column layout)
        pl.BlockSpec((1, 1, T), lambda b: (b, 0, 0)),      # mask (row layout)
    ] + [_full_block(p) for p in flat_params]

    # Padded activations live in VMEM in compute_dtype (half the scratch and half
    # the vld/vst traffic vs f32 when compute_dtype=bf16).
    scratch_shapes = [pltpu.VMEM((t_pad, idim), compute_dtype)]
    if n_layers > 1:
        scratch_shapes.append(pltpu.VMEM((t_pad, n_chans), compute_dtype))

    kernel = functools.partial(
        _fused_dp_kernel, n_layers=n_layers, kernel_size=K,
        pad_l=pad_l, pad_r=pad_r, align=align, eps=1e-12)

    out = pl.pallas_call(
        kernel,
        out_shape=jax.ShapeDtypeStruct((B, 1, T), jnp.float32),
        grid=(B,),
        in_specs=in_specs,
        out_specs=pl.BlockSpec((1, 1, T), lambda b: (b, 0, 0)),
        scratch_shapes=scratch_shapes,
        compiler_params=pltpu.CompilerParams(
            # TODO(synk): on v7x verify 2-TC sharding of the batch axis; switch to
            # pltpu.CORE_PARALLEL if plain "parallel" does not split it.
            dimension_semantics=("parallel",),
            # 48 MiB fits v7x's 64 MiB/TC; raise toward ~100 MiB on v6e for
            # larger T or multi-element blocks.
            vmem_limit_bytes=48 * 1024 * 1024),
    )(xs, mask_col, mask_row, *flat_params)

    return out[:, 0, :]   # (B, T); dropping the size-1 axis is free


# ---------------------------------------------------------------------------
# Parameters (stored directly in the kernel layout).
# Mapping from PyTorch: w[k, c, co] == conv.weight[co, c, k];
# linear_w[0, c] == linear.weight[0, c].
# ---------------------------------------------------------------------------
def init_params(key, idim, n_layers=2, n_chans=384, kernel_size=3):
    params = {"conv": []}
    for idx in range(n_layers):
        in_chans = idim if idx == 0 else n_chans
        key, k_w, k_b = jax.random.split(key, 3)
        w = jax.random.normal(k_w, (kernel_size, in_chans, n_chans), jnp.float32) * 0.05
        b = jax.random.normal(k_b, (1, n_chans), jnp.float32) * 0.01
        params["conv"].append({"w": w, "b": b,
                               "gamma": jnp.ones((1, n_chans), jnp.float32),
                               "beta": jnp.zeros((1, n_chans), jnp.float32)})
    key, k_lw, k_lb = jax.random.split(key, 3)
    params["linear_w"] = jax.random.normal(k_lw, (1, n_chans), jnp.float32) * 0.05
    params["linear_b"] = jax.random.normal(k_lb, (1, 1), jnp.float32) * 0.01
    return params


# ---------------------------------------------------------------------------
# Pure-JAX reference (mirrors the PyTorch module, all f32)
# ---------------------------------------------------------------------------
def duration_predictor_reference(params, xs, x_masks, kernel_size=3, padding="SAME"):
    B, T, _ = xs.shape
    K = kernel_size
    pad = ((K - 1) // 2, (K - 1) // 2) if padding == "SAME" else (K - 1, 0)
    nonpad = 1.0 - x_masks.astype(jnp.float32)
    h = xs.astype(jnp.float32)
    for layer in params["conv"]:
        hp = jnp.pad(h, ((0, 0), pad, (0, 0)))
        y = sum(jnp.einsum("btc,cd->btd", hp[:, k:k + T, :], layer["w"][k],
                           precision=lax.Precision.HIGHEST) for k in range(K))
        y = y + layer["b"]
        y = jnp.maximum(y, 0.0)
        mean = y.mean(-1, keepdims=True)
        var = ((y - mean) ** 2).mean(-1, keepdims=True)
        y = (y - mean) / jnp.sqrt(var + 1e-12)
        y = y * layer["gamma"] + layer["beta"]
        h = y * nonpad[:, :, None]
    out = jnp.einsum("btc,c->bt", h, params["linear_w"][0],
                     precision=lax.Precision.HIGHEST) + params["linear_b"][0, 0]
    return out * nonpad


# ---------------------------------------------------------------------------
if __name__ == "__main__":
    key = jax.random.PRNGKey(0)

    # Small demo shapes (lane-aligned channels keep the per-tap matmuls clean).
    B, T, idim = 2, 64, 128
    n_layers, n_chans, K = 2, 128, 3

    key, k_x, k_p = jax.random.split(key, 3)
    xs = jax.random.normal(k_x, (B, T, idim), jnp.float32)
    x_masks = jnp.zeros((B, T), jnp.int32).at[1, -12:].set(1)   # last 12 frames padded

    params = init_params(k_p, idim, n_layers=n_layers, n_chans=n_chans, kernel_size=K)

    ref = duration_predictor_reference(params, xs, x_masks, kernel_size=K)

    # f32 path: tight check against the pure-JAX reference.
    out_f32 = duration_predictor_forward(params, xs, x_masks, kernel_size=K,
                                         padding="SAME", compute_dtype=jnp.float32)
    jax.block_until_ready(out_f32)
    assert out_f32.shape == (B, T), out_f32.shape
    err32 = float(jnp.max(jnp.abs(out_f32 - ref)))
    assert err32 < 2e-2, f"f32 kernel mismatch: max abs err {err32}"

    # bf16 MXU path (default; recommended on v6e/v7x): loose check.
    out_bf16 = duration_predictor_forward(params, xs, x_masks, kernel_size=K,
                                          padding="SAME", compute_dtype=jnp.bfloat16)
    jax.block_until_ready(out_bf16)
    assert out_bf16.shape == (B, T), out_bf16.shape
    err16 = float(jnp.max(jnp.abs(out_bf16 - ref)))
    assert err16 < 2e-1, f"bf16 kernel mismatch: max abs err {err16}"

    print("KERNEL_OK")
</pallas_src>

<mosaic_0001>
module attributes {stable_mosaic.version = 11 : i64} {
  func.func @_fused_dp_kernel(%arg0: i32, %arg1: memref<1x64x128xf32, #tpu.memory_space<vmem>>, %arg2: memref<1x64x1xf32, #tpu.memory_space<vmem>>, %arg3: memref<1x1x64xf32, #tpu.memory_space<vmem>>, %arg4: memref<3x128x128xf32, #tpu.memory_space<vmem>>, %arg5: memref<1x128xf32, #tpu.memory_space<vmem>>, %arg6: memref<1x128xf32, #tpu.memory_space<vmem>>, %arg7: memref<1x128xf32, #tpu.memory_space<vmem>>, %arg8: memref<3x128x128xf32, #tpu.memory_space<vmem>>, %arg9: memref<1x128xf32, #tpu.memory_space<vmem>>, %arg10: memref<1x128xf32, #tpu.memory_space<vmem>>, %arg11: memref<1x128xf32, #tpu.memory_space<vmem>>, %arg12: memref<1x128xf32, #tpu.memory_space<vmem>>, %arg13: memref<1x1xf32, #tpu.memory_space<vmem>>, %arg14: memref<1x1x64xf32, #tpu.memory_space<vmem>>, %arg15: memref<81x128xf32, #tpu.memory_space<vmem>>, %arg16: memref<81x128xf32, #tpu.memory_space<vmem>>) attributes {dimension_semantics = [#tpu.dimension_semantics<parallel>], iteration_bounds = array<i64: 2>, scalar_prefetch = 0 : i64, scratch_operands = 2 : i64, tpu.core_type = #tpu.core_type<tc>, window_params = [{transform_indices = @transform_0, window_bounds = array<i64: 1, 64, 128>}, {transform_indices = @transform_1, window_bounds = array<i64: 1, 64, 1>}, {transform_indices = @transform_2, window_bounds = array<i64: 1, 1, 64>}, {pipeline_mode = #tpu.pipeline_mode<synchronous>, transform_indices = @transform_3, window_bounds = array<i64: 3, 128, 128>}, {pipeline_mode = #tpu.pipeline_mode<synchronous>, transform_indices = @transform_4, window_bounds = array<i64: 1, 128>}, {pipeline_mode = #tpu.pipeline_mode<synchronous>, transform_indices = @transform_5, window_bounds = array<i64: 1, 128>}, {pipeline_mode = #tpu.pipeline_mode<synchronous>, transform_indices = @transform_6, window_bounds = array<i64: 1, 128>}, {pipeline_mode = #tpu.pipeline_mode<synchronous>, transform_indices = @transform_7, window_bounds = array<i64: 3, 128, 128>}, {pipeline_mode = #tpu.pipeline_mode<synchronous>, transform_indices = @transform_8, window_bounds = array<i64: 1, 128>}, {pipeline_mode = #tpu.pipeline_mode<synchronous>, transform_indices = @transform_9, window_bounds = array<i64: 1, 128>}, {pipeline_mode = #tpu.pipeline_mode<synchronous>, transform_indices = @transform_10, window_bounds = array<i64: 1, 128>}, {pipeline_mode = #tpu.pipeline_mode<synchronous>, transform_indices = @transform_11, window_bounds = array<i64: 1, 128>}, {pipeline_mode = #tpu.pipeline_mode<synchronous>, transform_indices = @transform_12, window_bounds = array<i64: 1, 1>}, {transform_indices = @transform_13, window_bounds = array<i64: 1, 1, 64>}]} {
    %c0 = arith.constant 0 : index
    %c0_0 = arith.constant 0 : index
    %c0_1 = arith.constant 0 : index
    %0 = vector.load %arg2[%c0, %c0_0, %c0_1] : memref<1x64x1xf32, #tpu.memory_space<vmem>>, vector<1x64x1xf32>
    %1 = vector.shape_cast %0 : vector<1x64x1xf32> to vector<64x1xf32>
    %2 = vector.shape_cast %1 : vector<64x1xf32> to vector<64x1xf32>
    %3 = vector.broadcast %2 : vector<64x1xf32> to vector<64x128xf32>
    %c0_2 = arith.constant 0 : index
    %c0_3 = arith.constant 0 : index
    %c0_4 = arith.constant 0 : index
    %4 = vector.load %arg3[%c0_2, %c0_3, %c0_4] : memref<1x1x64xf32, #tpu.memory_space<vmem>>, vector<1x1x64xf32>
    %5 = vector.shape_cast %4 : vector<1x1x64xf32> to vector<1x64xf32>
    %cst = arith.constant 0.000000e+00 : f32
    %6 = vector.broadcast %cst : f32 to vector<16x128xf32>
    %c0_5 = arith.constant 0 : index
    %c0_6 = arith.constant 0 : index
    %7 = vector.load %arg15[%c0_5, %c0_6] : memref<81x128xf32, #tpu.memory_space<vmem>>, vector<16x128xf32>
    tpu.vector_store %arg15[%c0_5, %c0_6], %6 {strides = array<i32>} : memref<81x128xf32, #tpu.memory_space<vmem>>, vector<16x128xf32>,
    %cst_7 = arith.constant 0.000000e+00 : f32
    %8 = vector.broadcast %cst_7 : f32 to vector<1x128xf32>
    %c80 = arith.constant 80 : index
    %c0_8 = arith.constant 0 : index
    %9 = vector.load %arg15[%c80, %c0_8] : memref<81x128xf32, #tpu.memory_space<vmem>>, vector<1x128xf32>
    tpu.vector_store %arg15[%c80, %c0_8], %8 {strides = array<i32>} : memref<81x128xf32, #tpu.memory_space<vmem>>, vector<1x128xf32>,
    %c0_9 = arith.constant 0 : index
    %c0_10 = arith.constant 0 : index
    %c0_11 = arith.constant 0 : index
    %10 = vector.load %arg1[%c0_9, %c0_10, %c0_11] : memref<1x64x128xf32, #tpu.memory_space<vmem>>, vector<1x64x128xf32>
    %11 = vector.shape_cast %10 : vector<1x64x128xf32> to vector<64x128xf32>
    %c16 = arith.constant 16 : index
    %c0_12 = arith.constant 0 : index
    %12 = vector.load %arg15[%c16, %c0_12] : memref<81x128xf32, #tpu.memory_space<vmem>>, vector<64x128xf32>
    tpu.vector_store %arg15[%c16, %c0_12], %11 {strides = array<i32>} : memref<81x128xf32, #tpu.memory_space<vmem>>, vector<64x128xf32>,
    %cst_13 = arith.constant 0.000000e+00 : f32
    %13 = vector.broadcast %cst_13 : f32 to vector<16x128xf32>
    %c0_14 = arith.constant 0 : index
    %c0_15 = arith.constant 0 : index
    %14 = vector.load %arg16[%c0_14, %c0_15] : memref<81x128xf32, #tpu.memory_space<vmem>>, vector<16x128xf32>
    tpu.vector_store %arg16[%c0_14, %c0_15], %13 {strides = array<i32>} : memref<81x128xf32, #tpu.memory_space<vmem>>, vector<16x128xf32>,
    %cst_16 = arith.constant 0.000000e+00 : f32
    %15 = vector.broadcast %cst_16 : f32 to vector<1x128xf32>
    %c80_17 = arith.constant 80 : index
    %c0_18 = arith.constant 0 : index
    %16 = vector.load %arg16[%c80_17, %c0_18] : memref<81x128xf32, #tpu.memory_space<vmem>>, vector<1x128xf32>
    tpu.vector_store %arg16[%c80_17, %c0_18], %15 {strides = array<i32>} : memref<81x128xf32, #tpu.memory_space<vmem>>, vector<1x128xf32>,
    %c15 = arith.constant 15 : index
    %c0_19 = arith.constant 0 : index
    %17 = vector.load %arg15[%c15, %c0_19] : memref<81x128xf32, #tpu.memory_space<vmem>>, vector<64x128xf32>
    %c0_20 = arith.constant 0 : index
    %c0_21 = arith.constant 0 : index
    %c0_22 = arith.constant 0 : index
    %18 = vector.load %arg4[%c0_20, %c0_21, %c0_22] : memref<3x128x128xf32, #tpu.memory_space<vmem>>, vector<1x128x128xf32>
    %19 = vector.shape_cast %18 : vector<1x128x128xf32> to vector<128x128xf32>
    %cst_23 = arith.constant dense<0.000000e+00> : vector<64x128xf32>
    %20 = tpu.matmul %17, %19, %cst_23 {dimension_numbers = #tpu.dot_dimension_numbers<[1], [0], [0], [1], [0, 0, 1, 1], [], []>} : vector<64x128xf32>, vector<128x128xf32>, vector<64x128xf32> -> vector<64x128xf32>
    %c16_24 = arith.constant 16 : index
    %c0_25 = arith.constant 0 : index
    %21 = vector.load %arg15[%c16_24, %c0_25] : memref<81x128xf32, #tpu.memory_space<vmem>>, vector<64x128xf32>
    %c1 = arith.constant 1 : index
    %c0_26 = arith.constant 0 : index
    %c0_27 = arith.constant 0 : index
    %22 = vector.load %arg4[%c1, %c0_26, %c0_27] : memref<3x128x128xf32, #tpu.memory_space<vmem>>, vector<1x128x128xf32>
    %23 = vector.shape_cast %22 : vector<1x128x128xf32> to vector<128x128xf32>
    %cst_28 = arith.constant dense<0.000000e+00> : vector<64x128xf32>
    %24 = tpu.matmul %21, %23, %cst_28 {dimension_numbers = #tpu.dot_dimension_numbers<[1], [0], [0], [1], [0, 0, 1, 1], [], []>} : vector<64x128xf32>, vector<128x128xf32>, vector<64x128xf32> -> vector<64x128xf32>
    %25 = arith.addf %20, %24 : vector<64x128xf32>
    %c17 = arith.constant 17 : index
    %c0_29 = arith.constant 0 : index
    %26 = vector.load %arg15[%c17, %c0_29] : memref<81x128xf32, #tpu.memory_space<vmem>>, vector<64x128xf32>
    %c2 = arith.constant 2 : index
    %c0_30 = arith.constant 0 : index
    %c0_31 = arith.constant 0 : index
    %27 = vector.load %arg4[%c2, %c0_30, %c0_31] : memref<3x128x128xf32, #tpu.memory_space<vmem>>, vector<1x128x128xf32>
    %28 = vector.shape_cast %27 : vector<1x128x128xf32> to vector<128x128xf32>
    %cst_32 = arith.constant dense<0.000000e+00> : vector<64x128xf32>
    %29 = tpu.matmul %26, %28, %cst_32 {dimension_numbers = #tpu.dot_dimension_numbers<[1], [0], [0], [1], [0, 0, 1, 1], [], []>} : vector<64x128xf32>, vector<128x128xf32>, vector<64x128xf32> -> vector<64x128xf32>
    %30 = arith.addf %25, %29 : vector<64x128xf32>
    %c0_33 = arith.constant 0 : index
    %c0_34 = arith.constant 0 : index
    %31 = vector.load %arg5[%c0_33, %c0_34] : memref<1x128xf32, #tpu.memory_space<vmem>>, vector<1x128xf32>
    %32 = vector.broadcast %31 : vector<1x128xf32> to vector<64x128xf32>
    %33 = arith.addf %30, %32 : vector<64x128xf32>
    %cst_35 = arith.constant 0.000000e+00 : f32
    %34 = vector.broadcast %cst_35 : f32 to vector<64x128xf32>
    %35 = arith.maximumf %33, %34 : vector<64x128xf32>
    %cst_36 = arith.constant dense<0.000000e+00> : vector<64xf32>
    %36 = vector.multi_reduction <add>, %35, %cst_36 [1] : vector<64x128xf32> to vector<64xf32>
    %37 = vector.shape_cast %36 : vector<64xf32> to vector<64x1xf32>
    %cst_37 = arith.constant 7.812500e-03 : f32
    %38 = vector.broadcast %cst_37 : f32 to vector<64x1xf32>
    %39 = arith.mulf %37, %38 : vector<64x1xf32>
    %40 = vector.broadcast %39 : vector<64x1xf32> to vector<64x128xf32>
    %41 = arith.subf %35, %40 : vector<64x128xf32>
    %42 = arith.mulf %41, %41 : vector<64x128xf32>
    %cst_38 = arith.constant dense<0.000000e+00> : vector<64xf32>
    %43 = vector.multi_reduction <add>, %42, %cst_38 [1] : vector<64x128xf32> to vector<64xf32>
    %44 = vector.shape_cast %43 : vector<64xf32> to vector<64x1xf32>
    %cst_39 = arith.constant 7.812500e-03 : f32
    %45 = vector.broadcast %cst_39 : f32 to vector<64x1xf32>
    %46 = arith.mulf %44, %45 : vector<64x1xf32>
    %cst_40 = arith.constant 9.99999996E-13 : f32
    %47 = vector.broadcast %cst_40 : f32 to vector<64x1xf32>
    %48 = arith.addf %46, %47 : vector<64x1xf32>
    %49 = math.rsqrt %48 : vector<64x1xf32>
    %50 = vector.broadcast %49 : vector<64x1xf32> to vector<64x128xf32>
    %51 = arith.mulf %41, %50 : vector<64x128xf32>
    %c0_41 = arith.constant 0 : index
    %c0_42 = arith.constant 0 : index
    %52 = vector.load %arg6[%c0_41, %c0_42] : memref<1x128xf32, #tpu.memory_space<vmem>>, vector<1x128xf32>
    %53 = vector.broadcast %52 : vector<1x128xf32> to vector<64x128xf32>
    %54 = arith.mulf %51, %53 : vector<64x128xf32>
    %c0_43 = arith.constant 0 : index
    %c0_44 = arith.constant 0 : index
    %55 = vector.load %arg7[%c0_43, %c0_44] : memref<1x128xf32, #tpu.memory_space<vmem>>, vector<1x128xf32>
    %56 = vector.broadcast %55 : vector<1x128xf32> to vector<64x128xf32>
    %57 = arith.addf %54, %56 : vector<64x128xf32>
    %58 = arith.mulf %57, %3 : vector<64x128xf32>
    %c16_45 = arith.constant 16 : index
    %c0_46 = arith.constant 0 : index
    %59 = vector.load %arg16[%c16_45, %c0_46] : memref<81x128xf32, #tpu.memory_space<vmem>>, vector<64x128xf32>
    tpu.vector_store %arg16[%c16_45, %c0_46], %58 {strides = array<i32>} : memref<81x128xf32, #tpu.memory_space<vmem>>, vector<64x128xf32>,
    %c15_47 = arith.constant 15 : index
    %c0_48 = arith.constant 0 : index
    %60 = vector.load %arg16[%c15_47, %c0_48] : memref<81x128xf32, #tpu.memory_space<vmem>>, vector<64x128xf32>
    %c0_49 = arith.constant 0 : index
    %c0_50 = arith.constant 0 : index
    %c0_51 = arith.constant 0 : index
    %61 = vector.load %arg8[%c0_49, %c0_50, %c0_51] : memref<3x128x128xf32, #tpu.memory_space<vmem>>, vector<1x128x128xf32>
    %62 = vector.shape_cast %61 : vector<1x128x128xf32> to vector<128x128xf32>
    %cst_52 = arith.constant dense<0.000000e+00> : vector<64x128xf32>
    %63 = tpu.matmul %60, %62, %cst_52 {dimension_numbers = #tpu.dot_dimension_numbers<[1], [0], [0], [1], [0, 0, 1, 1], [], []>} : vector<64x128xf32>, vector<128x128xf32>, vector<64x128xf32> -> vector<64x128xf32>
    %c16_53 = arith.constant 16 : index
    %c0_54 = arith.constant 0 : index
    %64 = vector.load %arg16[%c16_53, %c0_54] : memref<81x128xf32, #tpu.memory_space<vmem>>, vector<64x128xf32>
    %c1_55 = arith.constant 1 : index
    %c0_56 = arith.constant 0 : index
    %c0_57 = arith.constant 0 : index
    %65 = vector.load %arg8[%c1_55, %c0_56, %c0_57] : memref<3x128x128xf32, #tpu.memory_space<vmem>>, vector<1x128x128xf32>
    %66 = vector.shape_cast %65 : vector<1x128x128xf32> to vector<128x128xf32>
    %cst_58 = arith.constant dense<0.000000e+00> : vector<64x128xf32>
    %67 = tpu.matmul %64, %66, %cst_58 {dimension_numbers = #tpu.dot_dimension_numbers<[1], [0], [0], [1], [0, 0, 1, 1], [], []>} : vector<64x128xf32>, vector<128x128xf32>, vector<64x128xf32> -> vector<64x128xf32>
    %68 = arith.addf %63, %67 : vector<64x128xf32>
    %c17_59 = arith.constant 17 : index
    %c0_60 = arith.constant 0 : index
    %69 = vector.load %arg16[%c17_59, %c0_60] : memref<81x128xf32, #tpu.memory_space<vmem>>, vector<64x128xf32>
    %c2_61 = arith.constant 2 : index
    %c0_62 = arith.constant 0 : index
    %c0_63 = arith.constant 0 : index
    %70 = vector.load %arg8[%c2_61, %c0_62, %c0_63] : memref<3x128x128xf32, #tpu.memory_space<vmem>>, vector<1x128x128xf32>
    %71 = vector.shape_cast %70 : vector<1x128x128xf32> to vector<128x128xf32>
    %cst_64 = arith.constant dense<0.000000e+00> : vector<64x128xf32>
    %72 = tpu.matmul %69, %71, %cst_64 {dimension_numbers = #tpu.dot_dimension_numbers<[1], [0], [0], [1], [0, 0, 1, 1], [], []>} : vector<64x128xf32>, vector<128x128xf32>, vector<64x128xf32> -> vector<64x128xf32>
    %73 = arith.addf %68, %72 : vector<64x128xf32>
    %c0_65 = arith.constant 0 : index
    %c0_66 = arith.constant 0 : index
    %74 = vector.load %arg9[%c0_65, %c0_66] : memref<1x128xf32, #tpu.memory_space<vmem>>, vector<1x128xf32>
    %75 = vector.broadcast %74 : vector<1x128xf32> to vector<64x128xf32>
    %76 = arith.addf %73, %75 : vector<64x128xf32>
    %cst_67 = arith.constant 0.000000e+00 : f32
    %77 = vector.broadcast %cst_67 : f32 to vector<64x128xf32>
    %78 = arith.maximumf %76, %77 : vector<64x128xf32>
    %cst_68 = arith.constant dense<0.000000e+00> : vector<64xf32>
    %79 = vector.multi_reduction <add>, %78, %cst_68 [1] : vector<64x128xf32> to vector<64xf32>
    %80 = vector.shape_cast %79 : vector<64xf32> to vector<64x1xf32>
    %cst_69 = arith.constant 7.812500e-03 : f32
    %81 = vector.broadcast %cst_69 : f32 to vector<64x1xf32>
    %82 = arith.mulf %80, %81 : vector<64x1xf32>
    %83 = vector.broadcast %82 : vector<64x1xf32> to vector<64x128xf32>
    %84 = arith.subf %78, %83 : vector<64x128xf32>
    %85 = arith.mulf %84, %84 : vector<64x128xf32>
    %cst_70 = arith.constant dense<0.000000e+00> : vector<64xf32>
    %86 = vector.multi_reduction <add>, %85, %cst_70 [1] : vector<64x128xf32> to vector<64xf32>
    %87 = vector.shape_cast %86 : vector<64xf32> to vector<64x1xf32>
    %cst_71 = arith.constant 7.812500e-03 : f32
    %88 = vector.broadcast %cst_71 : f32 to vector<64x1xf32>
    %89 = arith.mulf %87, %88 : vector<64x1xf32>
    %cst_72 = arith.constant 9.99999996E-13 : f32
    %90 = vector.broadcast %cst_72 : f32 to vector<64x1xf32>
    %91 = arith.addf %89, %90 : vector<64x1xf32>
    %92 = math.rsqrt %91 : vector<64x1xf32>
    %93 = vector.broadcast %92 : vector<64x1xf32> to vector<64x128xf32>
    %94 = arith.mulf %84, %93 : vector<64x128xf32>
    %c0_73 = arith.constant 0 : index
    %c0_74 = arith.constant 0 : index
    %95 = vector.load %arg10[%c0_73, %c0_74] : memref<1x128xf32, #tpu.memory_space<vmem>>, vector<1x128xf32>
    %96 = vector.broadcast %95 : vector<1x128xf32> to vector<64x128xf32>
    %97 = arith.mulf %94, %96 : vector<64x128xf32>
    %c0_75 = arith.constant 0 : index
    %c0_76 = arith.constant 0 : index
    %98 = vector.load %arg11[%c0_75, %c0_76] : memref<1x128xf32, #tpu.memory_space<vmem>>, vector<1x128xf32>
    %99 = vector.broadcast %98 : vector<1x128xf32> to vector<64x128xf32>
    %100 = arith.addf %97, %99 : vector<64x128xf32>
    %101 = arith.mulf %100, %3 : vector<64x128xf32>
    %c0_77 = arith.constant 0 : index
    %c0_78 = arith.constant 0 : index
    %102 = vector.load %arg12[%c0_77, %c0_78] : memref<1x128xf32, #tpu.memory_space<vmem>>, vector<1x128xf32>
    %cst_79 = arith.constant dense<0.000000e+00> : vector<1x64xf32>
    %103 = tpu.matmul %102, %101, %cst_79 {dimension_numbers = #tpu.dot_dimension_numbers<[1], [1], [0], [0], [0, 0, 1, 0], [], []>} : vector<1x128xf32>, vector<64x128xf32>, vector<1x64xf32> -> vector<1x64xf32>
    %c0_80 = arith.constant 0 : index
    %c0_81 = arith.constant 0 : index
    %104 = vector.load %arg13[%c0_80, %c0_81] : memref<1x1xf32, #tpu.memory_space<vmem>>, vector<1x1xf32>
    %105 = vector.broadcast %104 : vector<1x1xf32> to vector<1x64xf32>
    %106 = arith.addf %103, %105 : vector<1x64xf32>
    %107 = arith.mulf %106, %5 : vector<1x64xf32>
    %108 = vector.shape_cast %107 : vector<1x64xf32> to vector<1x1x64xf32>
    %c0_82 = arith.constant 0 : index
    %c0_83 = arith.constant 0 : index
    %c0_84 = arith.constant 0 : index
    %109 = vector.load %arg14[%c0_82, %c0_83, %c0_84] : memref<1x1x64xf32, #tpu.memory_space<vmem>>, vector<1x1x64xf32>
    tpu.vector_store %arg14[%c0_82, %c0_83, %c0_84], %108 {strides = array<i32>} : memref<1x1x64xf32, #tpu.memory_space<vmem>>, vector<1x1x64xf32>,
    return
  }
  func.func @transform_0(%arg0: i32) -> (i32, i32, i32) {
    %c0_i32 = arith.constant 0 : i32
    %c0_i32_0 = arith.constant 0 : i32
    %c0_i32_1 = arith.constant 0 : i32
    return %arg0, %c0_i32, %c0_i32_0 : i32, i32, i32
  }
  func.func @transform_1(%arg0: i32) -> (i32, i32, i32) {
    %c0_i32 = arith.constant 0 : i32
    %c0_i32_0 = arith.constant 0 : i32
    %c0_i32_1 = arith.constant 0 : i32
    return %arg0, %c0_i32, %c0_i32_0 : i32, i32, i32
  }
  func.func @transform_2(%arg0: i32) -> (i32, i32, i32) {
    %c0_i32 = arith.constant 0 : i32
    %c0_i32_0 = arith.constant 0 : i32
    %c0_i32_1 = arith.constant 0 : i32
    return %arg0, %c0_i32, %c0_i32_0 : i32, i32, i32
  }
  func.func @transform_3(%arg0: i32) -> (i32, i32, i32) {
    %c0_i32 = arith.constant 0 : i32
    %c0_i32_0 = arith.constant 0 : i32
    %c0_i32_1 = arith.constant 0 : i32
    %c0_i32_2 = arith.constant 0 : i32
    return %c0_i32, %c0_i32_0, %c0_i32_1 : i32, i32, i32
  }
  func.func @transform_4(%arg0: i32) -> (i32, i32) {
    %c0_i32 = arith.constant 0 : i32
    %c0_i32_0 = arith.constant 0 : i32
    %c0_i32_1 = arith.constant 0 : i32
    return %c0_i32, %c0_i32_0 : i32, i32
  }
  func.func @transform_5(%arg0: i32) -> (i32, i32) {
    %c0_i32 = arith.constant 0 : i32
    %c0_i32_0 = arith.constant 0 : i32
    %c0_i32_1 = arith.constant 0 : i32
    return %c0_i32, %c0_i32_0 : i32, i32
  }
  func.func @transform_6(%arg0: i32) -> (i32, i32) {
    %c0_i32 = arith.constant 0 : i32
    %c0_i32_0 = arith.constant 0 : i32
    %c0_i32_1 = arith.constant 0 : i32
    return %c0_i32, %c0_i32_0 : i32, i32
  }
  func.func @transform_7(%arg0: i32) -> (i32, i32, i32) {
    %c0_i32 = arith.constant 0 : i32
    %c0_i32_0 = arith.constant 0 : i32
    %c0_i32_1 = arith.constant 0 : i32
    %c0_i32_2 = arith.constant 0 : i32
    return %c0_i32, %c0_i32_0, %c0_i32_1 : i32, i32, i32
  }
  func.func @transform_8(%arg0: i32) -> (i32, i32) {
    %c0_i32 = arith.constant 0 : i32
    %c0_i32_0 = arith.constant 0 : i32
    %c0_i32_1 = arith.constant 0 : i32
    return %c0_i32, %c0_i32_0 : i32, i32
  }
  func.func @transform_9(%arg0: i32) -> (i32, i32) {
    %c0_i32 = arith.constant 0 : i32
    %c0_i32_0 = arith.constant 0 : i32
    %c0_i32_1 = arith.constant 0 : i32
    return %c0_i32, %c0_i32_0 : i32, i32
  }
  func.func @transform_10(%arg0: i32) -> (i32, i32) {
    %c0_i32 = arith.constant 0 : i32
    %c0_i32_0 = arith.constant 0 : i32
    %c0_i32_1 = arith.constant 0 : i32
    return %c0_i32, %c0_i32_0 : i32, i32
  }
  func.func @transform_11(%arg0: i32) -> (i32, i32) {
    %c0_i32 = arith.constant 0 : i32
    %c0_i32_0 = arith.constant 0 : i32
    %c0_i32_1 = arith.constant 0 : i32
    return %c0_i32, %c0_i32_0 : i32, i32
  }
  func.func @transform_12(%arg0: i32) -> (i32, i32) {
    %c0_i32 = arith.constant 0 : i32
    %c0_i32_0 = arith.constant 0 : i32
    %c0_i32_1 = arith.constant 0 : i32
    return %c0_i32, %c0_i32_0 : i32, i32
  }
  func.func @transform_13(%arg0: i32) -> (i32, i32, i32) {
    %c0_i32 = arith.constant 0 : i32
    %c0_i32_0 = arith.constant 0 : i32
    %c0_i32_1 = arith.constant 0 : i32
    return %arg0, %c0_i32, %c0_i32_0 : i32, i32, i32
  }
}

</mosaic_0001>

<llo_original>
// kernel: duration_predictor_forward.1
$region0: #{duration_predictor_forward.1}
  #allocation0 [shape = 'u32[]', space=smem, size = 0x4, offset = 0x4, fixed_abs, tag = 'smem constant byte address 0x4 - core index']
  #allocation1 [shape = 'u32[144,128]{1,0:T(1,128)}', space=vmem, size = 0x12000, scoped, tag = 'internal scratch']
  #allocation2 [shape = 'f32[81,128]{1,0:T(8,128)}', space=vmem, size = 0xb000, scoped, tag = 'scratch operand']
  #allocation3 [shape = 'f32[81,128]{1,0:T(8,128)}', space=vmem, size = 0xb000, scoped, tag = 'scratch operand']
  #allocation4 [shape = 'f32[1,1]{1,0:T(1,128)S(1)}', space=vmem, size = 0x200, scoped, tag = 'scoped memory for duration_predictor_forward.1']
  %s0 = inlined_call_operand.vmem [shape: f32[2,64,128], index: 0, kind: input, shape index: {}]
  %s1 = inlined_call_operand.vmem [shape: f32[2,64,1], index: 1, kind: input, shape index: {}]
  %s2 = inlined_call_operand.vmem [shape: f32[2,1,64], index: 2, kind: input, shape index: {}]
  %s3 = inlined_call_operand.hbm [shape: f32[3,128,128], index: 3, kind: input, shape index: {}]
  %s4 = inlined_call_operand.vmem [shape: f32[1,128], index: 4, kind: input, shape index: {}]
  %s5 = inlined_call_operand.vmem [shape: f32[1,128], index: 5, kind: input, shape index: {}]
  %s6 = inlined_call_operand.vmem [shape: f32[1,128], index: 6, kind: input, shape index: {}]
  %s7 = inlined_call_operand.hbm [shape: f32[3,128,128], index: 7, kind: input, shape index: {}]
  %s8 = inlined_call_operand.vmem [shape: f32[1,128], index: 8, kind: input, shape index: {}]
  %s9 = inlined_call_operand.vmem [shape: f32[1,128], index: 9, kind: input, shape index: {}]
  %s10 = inlined_call_operand.vmem [shape: f32[1,128], index: 10, kind: input, shape index: {}]
  %s11 = inlined_call_operand.vmem [shape: f32[1,128], index: 11, kind: input, shape index: {}]
  %s12 = inlined_call_operand.<no memory space> [shape: f32[1,1], index: 12, kind: input, shape index: {}]
  %s13 = inlined_call_operand.hbm [shape: f32[2,1,64], index: 13, kind: output, shape index: {}]
  %s14 = sld [smem:[#allocation0]]
  $region93: #{duration_predictor_forward.1} parent=0
    _
  %s16 = ssub.s32 1, %s14
  %s17 = scalar_select 0, %s16, %s14
  %v18 = vstv %s12
  %19 = vst [vmem:[#allocation4] sm:$0x1] %v18
  $region1: #{duration_predictor_forward.1} parent=0
    #allocation5 [shape = 'u8[196608]{0}', space=vmem, size = 0x30000, scoped, tag = 'input window, operand 3, single buffered']
    #allocation6 [shape = 's32[2]{0}', space=sflag, size = 0x8, scoped, tag = 'scoped memory for duration_predictor_forward.1']
    #allocation7 [shape = 's32[2]{0}', space=sflag, size = 0x8, scoped, tag = 'scoped memory for duration_predictor_forward.1']
    #allocation8 [shape = 'u8[196608]{0}', space=vmem, size = 0x30000, scoped, tag = 'input window, operand 7, single buffered']
    #allocation9 [shape = 's32[1]{0}', space=sflag, size = 0x4, scoped, tag = 'scoped memory for duration_predictor_forward.1']
    #allocation10 [shape = 'u8[1024]{0}', space=vmem, size = 0x400, scoped, tag = 'output window, operand 0']
    %20 = vsyncpa [#allocation6], 0
    %21 = vsyncpa [#allocation9], 0
    %22 = vsyncpa [#allocation7], 0
    %s23 = scalar_lea.sflag [#allocation7], 1
    %24 = vsyncpa %s23, 0
    loop: start=0, step=1, limit=4
    $region2: #{duration_predictor_forward.1} parent=1 // loop_pre_header
      _
    $region3: #{duration_predictor_forward.1} parent=1 // loop_header
      %s26 = sphi 0, %s30
      %p27 = scmp.ge.s32.totalorder %s26, 4
      %s36 = sphi 0, %s38
      %s39 = sphi 0, %s36
      %s40 = sphi 0, %s39
      %s56 = sphi 0, %s40
      %s62 = sphi 0, %s64
      %s65 = sphi 0, %s62
      %s66 = sphi 0, %s65
      %s82 = sphi 0, %s66
      %s88 = sphi 0, %s90
      %s91 = sphi 0, %s88
      %s92 = sphi 0, %s91
      %s108 = sphi 0, %s92
      %s112 = sphi 0, %s112
      %s114 = sphi 0, %s112
      %s115 = sphi 0, %s114
      %s129 = sphi 0, %s115
      %s133 = sphi 0, %s133
      %s135 = sphi 0, %s133
      %s136 = sphi 0, %s135
      %s150 = sphi 0, %s136
      %s154 = sphi 0, %s154
      %s156 = sphi 0, %s154
      %s157 = sphi 0, %s156
      %s171 = sphi 0, %s157
      %s175 = sphi 0, %s175
      %s177 = sphi 0, %s175
      %s178 = sphi 0, %s177
      %s192 = sphi 0, %s178
      %s196 = sphi 0, %s196
      %s198 = sphi 0, %s196
      %s199 = sphi 0, %s198
      %s213 = sphi 0, %s199
      %s217 = sphi 0, %s217
      %s219 = sphi 0, %s217
      %s220 = sphi 0, %s219
      %s234 = sphi 0, %s220
      %s238 = sphi 0, %s238
      %s240 = sphi 0, %s238
      %s241 = sphi 0, %s240
      %s255 = sphi 0, %s241
      %s259 = sphi 0, %s259
      %s261 = sphi 0, %s259
      %s262 = sphi 0, %s261
      %s276 = sphi 0, %s262
      %s280 = sphi 0, %s280
      %s282 = sphi 0, %s280
      %s283 = sphi 0, %s282
      %s297 = sphi 0, %s283
      %s301 = sphi 0, %s301
      %s303 = sphi 0, %s301
      %s304 = sphi 0, %s303
      %s318 = sphi 0, %s304
      %s324 = sphi 0, %s326
      %s327 = sphi 0, %s324
      %s328 = sphi 0, %s327
      %s344 = sphi 0, %s328
    $region4: #{duration_predictor_forward.1} parent=1 // loop_header_branch
      %29 = sbr.rel (%p27) target = $region8
    $region5: #{duration_predictor_forward.1} parent=1 // loop_body
      %s31 = ssub.s32 %s26, 1
      %s32 = ssub.s32 %s26, 2
      %s33 = sadd.s32 %s26, 1
      %s34 = ssub.s32 %s26, %s33
      %p35 = scmp.eq.s32.totalorder %s34, 0
      %s37 = sadd.s32 %s36, 1
      %s38 = scalar_select %p35, %s36, %s37
      %p41 = pneg %p35
      %p42 = scmp.eq.s32.totalorder %s26, 1
      %p43 = por %p41, %p42
      %p44 = scmp.ne.s32.totalorder %s36, %s39
      %p45 = scmp.eq.s32.totalorder %s26, 0
      %p46 = por %p44, %p45
      %p47 = scmp.ne.s32.totalorder %s36, %s39
      %p48 = scmp.eq.s32.totalorder %s31, 1
      %p49 = por %p47, %p48
      %p50 = scmp.ne.s32.totalorder %s39, %s40
      %p51 = scmp.eq.s32.totalorder %s31, 0
      %p52 = por %p50, %p51
      %p53 = scmp.ne.s32.totalorder %s39, %s40
      %p54 = scmp.eq.s32.totalorder %s32, 1
      %p55 = por %p53, %p54
      %p57 = scmp.ne.s32.totalorder %s40, %s56
      %p58 = scmp.eq.s32.totalorder %s32, 0
      %p59 = por %p57, %p58
      %s60 = ssub.s32 %s26, %s33
      %p61 = scmp.eq.s32.totalorder %s60, 0
      %s63 = sadd.s32 %s62, 1
      %s64 = scalar_select %p61, %s62, %s63
      %p67 = pneg %p61
      %p68 = scmp.eq.s32.totalorder %s26, 1
      %p69 = por %p67, %p68
      %p70 = scmp.ne.s32.totalorder %s62, %s65
      %p71 = scmp.eq.s32.totalorder %s26, 0
      %p72 = por %p70, %p71
      %p73 = scmp.ne.s32.totalorder %s62, %s65
      %p74 = scmp.eq.s32.totalorder %s31, 1
      %p75 = por %p73, %p74
      %p76 = scmp.ne.s32.totalorder %s65, %s66
      %p77 = scmp.eq.s32.totalorder %s31, 0
      %p78 = por %p76, %p77
      %p79 = scmp.ne.s32.totalorder %s65, %s66
      %p80 = scmp.eq.s32.totalorder %s32, 1
      %p81 = por %p79, %p80
      %p83 = scmp.ne.s32.totalorder %s66, %s82
      %p84 = scmp.eq.s32.totalorder %s32, 0
      %p85 = por %p83, %p84
      %s86 = ssub.s32 %s26, %s33
      %p87 = scmp.eq.s32.totalorder %s86, 0
      %s89 = sadd.s32 %s88, 1
      %s90 = scalar_select %p87, %s88, %s89
      %p93 = pneg %p87
      %p94 = scmp.eq.s32.totalorder %s26, 1
      %p95 = por %p93, %p94
      %p96 = scmp.ne.s32.totalorder %s88, %s91
      %p97 = scmp.eq.s32.totalorder %s26, 0
      %p98 = por %p96, %p97
      %p99 = scmp.ne.s32.totalorder %s88, %s91
      %p100 = scmp.eq.s32.totalorder %s31, 1
      %p101 = por %p99, %p100
      %p102 = scmp.ne.s32.totalorder %s91, %s92
      %p103 = scmp.eq.s32.totalorder %s31, 0
      %p104 = por %p102, %p103
      %p105 = scmp.ne.s32.totalorder %s91, %s92
      %p106 = scmp.eq.s32.totalorder %s32, 1
      %p107 = por %p105, %p106
      %p109 = scmp.ne.s32.totalorder %s92, %s108
      %p110 = scmp.eq.s32.totalorder %s32, 0
      %p111 = por %p109, %p110
      %s113 = sadd.s32 %s112, 1
      %p116 = scmp.eq.s32.totalorder %s26, 1
      %p117 = scmp.ne.s32.totalorder %s112, %s114
      %p118 = scmp.eq.s32.totalorder %s26, 0
      %p119 = por %p117, %p118
      %p120 = scmp.ne.s32.totalorder %s112, %s114
      %p121 = scmp.eq.s32.totalorder %s31, 1
      %p122 = por %p120, %p121
      %p123 = scmp.ne.s32.totalorder %s114, %s115
      %p124 = scmp.eq.s32.totalorder %s31, 0
      %p125 = por %p123, %p124
      %p126 = scmp.ne.s32.totalorder %s114, %s115
      %p127 = scmp.eq.s32.totalorder %s32, 1
      %p128 = por %p126, %p127
      %p130 = scmp.ne.s32.totalorder %s115, %s129
      %p131 = scmp.eq.s32.totalorder %s32, 0
      %p132 = por %p130, %p131
      %s134 = sadd.s32 %s133, 1
      %p137 = scmp.eq.s32.totalorder %s26, 1
      %p138 = scmp.ne.s32.totalorder %s133, %s135
      %p139 = scmp.eq.s32.totalorder %s26, 0
      %p140 = por %p138, %p139
      %p141 = scmp.ne.s32.totalorder %s133, %s135
      %p142 = scmp.eq.s32.totalorder %s31, 1
      %p143 = por %p141, %p142
      %p144 = scmp.ne.s32.totalorder %s135, %s136
      %p145 = scmp.eq.s32.totalorder %s31, 0
      %p146 = por %p144, %p145
      %p147 = scmp.ne.s32.totalorder %s135, %s136
      %p148 = scmp.eq.s32.totalorder %s32, 1
      %p149 = por %p147, %p148
      %p151 = scmp.ne.s32.totalorder %s136, %s150
      %p152 = scmp.eq.s32.totalorder %s32, 0
      %p153 = por %p151, %p152
      %s155 = sadd.s32 %s154, 1
      %p158 = scmp.eq.s32.totalorder %s26, 1
      %p159 = scmp.ne.s32.totalorder %s154, %s156
      %p160 = scmp.eq.s32.totalorder %s26, 0
      %p161 = por %p159, %p160
      %p162 = scmp.ne.s32.totalorder %s154, %s156
      %p163 = scmp.eq.s32.totalorder %s31, 1
      %p164 = por %p162, %p163
      %p165 = scmp.ne.s32.totalorder %s156, %s157
      %p166 = scmp.eq.s32.totalorder %s31, 0
      %p167 = por %p165, %p166
      %p168 = scmp.ne.s32.totalorder %s156, %s157
      %p169 = scmp.eq.s32.totalorder %s32, 1
      %p170 = por %p168, %p169
      %p172 = scmp.ne.s32.totalorder %s157, %s171
      %p173 = scmp.eq.s32.totalorder %s32, 0
      %p174 = por %p172, %p173
      %s176 = sadd.s32 %s175, 1
      %p179 = scmp.eq.s32.totalorder %s26, 1
      %p180 = scmp.ne.s32.totalorder %s175, %s177
      %p181 = scmp.eq.s32.totalorder %s26, 0
      %p182 = por %p180, %p181
      %p183 = scmp.ne.s32.totalorder %s175, %s177
      %p184 = scmp.eq.s32.totalorder %s31, 1
      %p185 = por %p183, %p184
      %p186 = scmp.ne.s32.totalorder %s177, %s178
      %p187 = scmp.eq.s32.totalorder %s31, 0
      %p188 = por %p186, %p187
      %p189 = scmp.ne.s32.totalorder %s177, %s178
      %p190 = scmp.eq.s32.totalorder %s32, 1
      %p191 = por %p189, %p190
      %p193 = scmp.ne.s32.totalorder %s178, %s192
      %p194 = scmp.eq.s32.totalorder %s32, 0
      %p195 = por %p193, %p194
      %s197 = sadd.s32 %s196, 1
      %p200 = scmp.eq.s32.totalorder %s26, 1
      %p201 = scmp.ne.s32.totalorder %s196, %s198
      %p202 = scmp.eq.s32.totalorder %s26, 0
      %p203 = por %p201, %p202
      %p204 = scmp.ne.s32.totalorder %s196, %s198
      %p205 = scmp.eq.s32.totalorder %s31, 1
      %p206 = por %p204, %p205
      %p207 = scmp.ne.s32.totalorder %s198, %s199
      %p208 = scmp.eq.s32.totalorder %s31, 0
      %p209 = por %p207, %p208
      %p210 = scmp.ne.s32.totalorder %s198, %s199
      %p211 = scmp.eq.s32.totalorder %s32, 1
      %p212 = por %p210, %p211
      %p214 = scmp.ne.s32.totalorder %s199, %s213
      %p215 = scmp.eq.s32.totalorder %s32, 0
      %p216 = por %p214, %p215
      %s218 = sadd.s32 %s217, 1
      %p221 = scmp.eq.s32.totalorder %s26, 1
      %p222 = scmp.ne.s32.totalorder %s217, %s219
      %p223 = scmp.eq.s32.totalorder %s26, 0
      %p224 = por %p222, %p223
      %p225 = scmp.ne.s32.totalorder %s217, %s219
      %p226 = scmp.eq.s32.totalorder %s31, 1
      %p227 = por %p225, %p226
      %p228 = scmp.ne.s32.totalorder %s219, %s220
      %p229 = scmp.eq.s32.totalorder %s31, 0
      %p230 = por %p228, %p229
      %p231 = scmp.ne.s32.totalorder %s219, %s220
      %p232 = scmp.eq.s32.totalorder %s32, 1
      %p233 = por %p231, %p232
      %p235 = scmp.ne.s32.totalorder %s220, %s234
      %p236 = scmp.eq.s32.totalorder %s32, 0
      %p237 = por %p235, %p236
      %s239 = sadd.s32 %s238, 1
      %p242 = scmp.eq.s32.totalorder %s26, 1
      %p243 = scmp.ne.s32.totalorder %s238, %s240
      %p244 = scmp.eq.s32.totalorder %s26, 0
      %p245 = por %p243, %p244
      %p246 = scmp.ne.s32.totalorder %s238, %s240
      %p247 = scmp.eq.s32.totalorder %s31, 1
      %p248 = por %p246, %p247
      %p249 = scmp.ne.s32.totalorder %s240, %s241
      %p250 = scmp.eq.s32.totalorder %s31, 0
      %p251 = por %p249, %p250
      %p252 = scmp.ne.s32.totalorder %s240, %s241
      %p253 = scmp.eq.s32.totalorder %s32, 1
      %p254 = por %p252, %p253
      %p256 = scmp.ne.s32.totalorder %s241, %s255
      %p257 = scmp.eq.s32.totalorder %s32, 0
      %p258 = por %p256, %p257
      %s260 = sadd.s32 %s259, 1
      %p263 = scmp.eq.s32.totalorder %s26, 1
      %p264 = scmp.ne.s32.totalorder %s259, %s261
      %p265 = scmp.eq.s32.totalorder %s26, 0
      %p266 = por %p264, %p265
      %p267 = scmp.ne.s32.totalorder %s259, %s261
      %p268 = scmp.eq.s32.totalorder %s31, 1
      %p269 = por %p267, %p268
      %p270 = scmp.ne.s32.totalorder %s261, %s262
      %p271 = scmp.eq.s32.totalorder %s31, 0
      %p272 = por %p270, %p271
      %p273 = scmp.ne.s32.totalorder %s261, %s262
      %p274 = scmp.eq.s32.totalorder %s32, 1
      %p275 = por %p273, %p274
      %p277 = scmp.ne.s32.totalorder %s262, %s276
      %p278 = scmp.eq.s32.totalorder %s32, 0
      %p279 = por %p277, %p278
      %s281 = sadd.s32 %s280, 1
      %p284 = scmp.eq.s32.totalorder %s26, 1
      %p285 = scmp.ne.s32.totalorder %s280, %s282
      %p286 = scmp.eq.s32.totalorder %s26, 0
      %p287 = por %p285, %p286
      %p288 = scmp.ne.s32.totalorder %s280, %s282
      %p289 = scmp.eq.s32.totalorder %s31, 1
      %p290 = por %p288, %p289
      %p291 = scmp.ne.s32.totalorder %s282, %s283
      %p292 = scmp.eq.s32.totalorder %s31, 0
      %p293 = por %p291, %p292
      %p294 = scmp.ne.s32.totalorder %s282, %s283
      %p295 = scmp.eq.s32.totalorder %s32, 1
      %p296 = por %p294, %p295
      %p298 = scmp.ne.s32.totalorder %s283, %s297
      %p299 = scmp.eq.s32.totalorder %s32, 0
      %p300 = por %p298, %p299
      %s302 = sadd.s32 %s301, 1
      %p305 = scmp.eq.s32.totalorder %s26, 1
      %p306 = scmp.ne.s32.totalorder %s301, %s303
      %p307 = scmp.eq.s32.totalorder %s26, 0
      %p308 = por %p306, %p307
      %p309 = scmp.ne.s32.totalorder %s301, %s303
      %p310 = scmp.eq.s32.totalorder %s31, 1
      %p311 = por %p309, %p310
      %p312 = scmp.ne.s32.totalorder %s303, %s304
      %p313 = scmp.eq.s32.totalorder %s31, 0
      %p314 = por %p312, %p313
      %p315 = scmp.ne.s32.totalorder %s303, %s304
      %p316 = scmp.eq.s32.totalorder %s32, 1
      %p317 = por %p315, %p316
      %p319 = scmp.ne.s32.totalorder %s304, %s318
      %p320 = scmp.eq.s32.totalorder %s32, 0
      %p321 = por %p319, %p320
      %s322 = ssub.s32 %s26, %s33
      %p323 = scmp.eq.s32.totalorder %s322, 0
      %s325 = sadd.s32 %s324, 1
      %s326 = scalar_select %p323, %s324, %s325
      %p329 = pneg %p323
      %p330 = scmp.eq.s32.totalorder %s26, 1
      %p331 = por %p329, %p330
      %p332 = scmp.ne.s32.totalorder %s324, %s327
      %p333 = scmp.eq.s32.totalorder %s26, 0
      %p334 = por %p332, %p333
      %p335 = scmp.ne.s32.totalorder %s324, %s327
      %p336 = scmp.eq.s32.totalorder %s31, 1
      %p337 = por %p335, %p336
      %p338 = scmp.ne.s32.totalorder %s327, %s328
      %p339 = scmp.eq.s32.totalorder %s31, 0
      %p340 = por %p338, %p339
      %p341 = scmp.ne.s32.totalorder %s327, %s328
      %p342 = scmp.eq.s32.totalorder %s32, 1
      %p343 = por %p341, %p342
      %p345 = scmp.ne.s32.totalorder %s328, %s344
      %p346 = scmp.eq.s32.totalorder %s32, 0
      %p347 = por %p345, %p346
      %p348 = scmp.le.s32.totalorder 1, %s26
      %p349 = scmp.lt.s32.totalorder %s26, 3
      %p350 = pnand %p348, %p349
      %p351 = pneg %p350
      // Predicated region
      $region9: #{duration_predictor_forward.1} parent=5 // pred_check
        _
      $region10: #{duration_predictor_forward.1} parent=5 // pred_check_branch
        %353 = sbr.rel (%p350) target = $region12
      $region11: #{duration_predictor_forward.1} parent=5 // pred_region
        %s354 = ssub.s32 %s26, 1
        // Predicated region
        $region13: #{duration_predictor_forward.1} parent=11 // pred_check
          %p355 = pneg %p125
        $region14: #{duration_predictor_forward.1} parent=11 // pred_check_branch
          %357 = sbr.rel (%p355) target = $region16
        $region15: #{duration_predictor_forward.1} parent=11 // pred_region
          %s359 = ssub.s32 6144, 6144
          %360 = vsyncadd [#allocation6], %s359
          %s361 = sshll.u32 [#allocation5], 4
          %s362 = int_to_ptr.vmem [resolvable:$true] %s361
          %367 = dma.hbm_to_vmem [thread:$0]  %s3, 6144, %s362, [#allocation6], 128, 128, 8
        $region16: #{duration_predictor_forward.1} parent=11 // pred_fallthru
          _
        // Predicated region
        $region17: #{duration_predictor_forward.1} parent=11 // pred_check
          %p368 = pneg %p146
        $region18: #{duration_predictor_forward.1} parent=11 // pred_check_branch
          %370 = sbr.rel (%p368) target = $region20
        $region19: #{duration_predictor_forward.1} parent=11 // pred_region
          _
        $region20: #{duration_predictor_forward.1} parent=11 // pred_fallthru
          _
        // Predicated region
        $region21: #{duration_predictor_forward.1} parent=11 // pred_check
          %p371 = pneg %p167
        $region22: #{duration_predictor_forward.1} parent=11 // pred_check_branch
          %373 = sbr.rel (%p371) target = $region24
        $region23: #{duration_predictor_forward.1} parent=11 // pred_region
          _
        $region24: #{duration_predictor_forward.1} parent=11 // pred_fallthru
          _
        // Predicated region
        $region25: #{duration_predictor_forward.1} parent=11 // pred_check
          %p374 = pneg %p188
        $region26: #{duration_predictor_forward.1} parent=11 // pred_check_branch
          %376 = sbr.rel (%p374) target = $region28
        $region27: #{duration_predictor_forward.1} parent=11 // pred_region
          _
        $region28: #{duration_predictor_forward.1} parent=11 // pred_fallthru
          _
        // Predicated region
        $region29: #{duration_predictor_forward.1} parent=11 // pred_check
          %p377 = pneg %p209
        $region30: #{duration_predictor_forward.1} parent=11 // pred_check_branch
          %379 = sbr.rel (%p377) target = $region32
        $region31: #{duration_predictor_forward.1} parent=11 // pred_region
          %s381 = ssub.s32 6144, 6144
          %382 = vsyncadd [#allocation9], %s381
          %s383 = sshll.u32 [#allocation8], 4
          %s384 = int_to_ptr.vmem [resolvable:$true] %s383
          %389 = dma.hbm_to_vmem [thread:$0]  %s7, 6144, %s384, [#allocation9], 128, 128, 8
        $region32: #{duration_predictor_forward.1} parent=11 // pred_fallthru
          _
        // Predicated region
        $region33: #{duration_predictor_forward.1} parent=11 // pred_check
          %p390 = pneg %p230
        $region34: #{duration_predictor_forward.1} parent=11 // pred_check_branch
          %392 = sbr.rel (%p390) target = $region36
        $region35: #{duration_predictor_forward.1} parent=11 // pred_region
          _
        $region36: #{duration_predictor_forward.1} parent=11 // pred_fallthru
          _
        // Predicated region
        $region37: #{duration_predictor_forward.1} parent=11 // pred_check
          %p393 = pneg %p251
        $region38: #{duration_predictor_forward.1} parent=11 // pred_check_branch
          %395 = sbr.rel (%p393) target = $region40
        $region39: #{duration_predictor_forward.1} parent=11 // pred_region
          _
        $region40: #{duration_predictor_forward.1} parent=11 // pred_fallthru
          _
        // Predicated region
        $region41: #{duration_predictor_forward.1} parent=11 // pred_check
          %p396 = pneg %p272
        $region42: #{duration_predictor_forward.1} parent=11 // pred_check_branch
          %398 = sbr.rel (%p396) target = $region44
        $region43: #{duration_predictor_forward.1} parent=11 // pred_region
          _
        $region44: #{duration_predictor_forward.1} parent=11 // pred_fallthru
          _
        // Predicated region
        $region45: #{duration_predictor_forward.1} parent=11 // pred_check
          %p399 = pneg %p293
        $region46: #{duration_predictor_forward.1} parent=11 // pred_check_branch
          %401 = sbr.rel (%p399) target = $region48
        $region47: #{duration_predictor_forward.1} parent=11 // pred_region
          _
        $region48: #{duration_predictor_forward.1} parent=11 // pred_fallthru
          _
        // Predicated region
        $region49: #{duration_predictor_forward.1} parent=11 // pred_check
          %p402 = pneg %p314
        $region50: #{duration_predictor_forward.1} parent=11 // pred_check_branch
          %404 = sbr.rel (%p402) target = $region52
        $region51: #{duration_predictor_forward.1} parent=11 // pred_region
          _
        $region52: #{duration_predictor_forward.1} parent=11 // pred_fallthru
          _
      $region12: #{duration_predictor_forward.1} parent=5 // pred_fallthru
        _
      %p405 = scmp.lt.s32.totalorder %s26, 2
      // Predicated region
      $region53: #{duration_predictor_forward.1} parent=5 // pred_check
        %p406 = pneg %p405
      $region54: #{duration_predictor_forward.1} parent=5 // pred_check_branch
        %408 = sbr.rel (%p406) target = $region56
      $region55: #{duration_predictor_forward.1} parent=5 // pred_region
        // Predicated region
        $region57: #{duration_predictor_forward.1} parent=55 // pred_check
          %p409 = pneg %p46
        $region58: #{duration_predictor_forward.1} parent=55 // pred_check_branch
          %411 = sbr.rel (%p409) target = $region60
        $region59: #{duration_predictor_forward.1} parent=55 // pred_region
          %p412 = scmp.lt.s32.totalorder %s26, 1
          %s413 = scalar_select %p412, %s26, 1
          %s414 = smul.addr %s413, 8
          %s415 = smul.addr %s414, 8
          %s416 = scalar_lea.vmem %s0, %s415
        $region60: #{duration_predictor_forward.1} parent=55 // pred_fallthru
          _
        // Predicated region
        $region61: #{duration_predictor_forward.1} parent=55 // pred_check
          %p417 = pneg %p72
        $region62: #{duration_predictor_forward.1} parent=55 // pred_check_branch
          %419 = sbr.rel (%p417) target = $region64
        $region63: #{duration_predictor_forward.1} parent=55 // pred_region
          %p420 = scmp.lt.s32.totalorder %s26, 1
          %s421 = scalar_select %p420, %s26, 1
          %s422 = smul.addr %s421, 8
          %s423 = smul.addr %s422, 8
          %s424 = scalar_lea.vmem %s1, %s423
        $region64: #{duration_predictor_forward.1} parent=55 // pred_fallthru
          _
        // Predicated region
        $region65: #{duration_predictor_forward.1} parent=55 // pred_check
          %p425 = pneg %p98
        $region66: #{duration_predictor_forward.1} parent=55 // pred_check_branch
          %427 = sbr.rel (%p425) target = $region68
        $region67: #{duration_predictor_forward.1} parent=55 // pred_region
          %p428 = scmp.lt.s32.totalorder %s26, 1
          %s429 = scalar_select %p428, %s26, 1
          %s430 = scalar_lea.vmem %s2, %s429
        $region68: #{duration_predictor_forward.1} parent=55 // pred_fallthru
          _
      $region56: #{duration_predictor_forward.1} parent=5 // pred_fallthru
        _
      %p431 = scmp.le.s32.totalorder 1, %s26
      %p432 = scmp.lt.s32.totalorder %s26, 3
      %p433 = pnand %p431, %p432
      %p434 = pneg %p433
      // Predicated region
      $region69: #{duration_predictor_forward.1} parent=5 // pred_check
        _
      $region70: #{duration_predictor_forward.1} parent=5 // pred_check_branch
        %436 = sbr.rel (%p433) target = $region72
      $region71: #{duration_predictor_forward.1} parent=5 // pred_region
        %s437 = ssub.s32 %s26, 1
        // Predicated region
        $region73: #{duration_predictor_forward.1} parent=71 // pred_check
          %p438 = pneg %p125
        $region74: #{duration_predictor_forward.1} parent=71 // pred_check_branch
          %440 = sbr.rel (%p438) target = $region76
        $region75: #{duration_predictor_forward.1} parent=71 // pred_region
          %441 = dma.done [#allocation6], 6144
        $region76: #{duration_predictor_forward.1} parent=71 // pred_fallthru
          _
        // Predicated region
        $region77: #{duration_predictor_forward.1} parent=71 // pred_check
          %p442 = pneg %p209
        $region78: #{duration_predictor_forward.1} parent=71 // pred_check_branch
          %444 = sbr.rel (%p442) target = $region80
        $region79: #{duration_predictor_forward.1} parent=71 // pred_region
          %445 = dma.done [#allocation9], 6144
        $region80: #{duration_predictor_forward.1} parent=71 // pred_fallthru
          _
        %p446 = scmp.lt.s32.totalorder %s31, 1
        %s447 = scalar_select %p446, %s31, 1
        %s448 = smul.addr %s447, 8
        %s449 = smul.addr %s448, 8
        %s450 = scalar_lea.vmem %s0, %s449
        %p451 = pneg %p52
        %p452 = pneg %p49
        %p453 = scmp.lt.s32.totalorder %s31, 1
        %s454 = scalar_select %p453, %s31, 1
        %s455 = smul.addr %s454, 8
        %s456 = smul.addr %s455, 8
        %s457 = scalar_lea.vmem %s1, %s456
        %p458 = pneg %p78
        %p459 = pneg %p75
        %p460 = scmp.lt.s32.totalorder %s31, 1
        %s461 = scalar_select %p460, %s31, 1
        %s462 = scalar_lea.vmem %s2, %s461
        %p463 = pneg %p104
        %p464 = pneg %p101
        %p465 = pneg %p125
        %p466 = pneg %p122
        %p467 = pneg %p146
        %p468 = pneg %p143
        %p469 = pneg %p167
        %p470 = pneg %p164
        %p471 = pneg %p188
        %p472 = pneg %p185
        %p473 = pneg %p209
        %p474 = pneg %p206
        %p475 = pneg %p230
        %p476 = pneg %p227
        %p477 = pneg %p251
        %p478 = pneg %p248
        %p479 = pneg %p272
        %p480 = pneg %p269
        %p481 = pneg %p293
        %p482 = pneg %p290
        %p483 = pneg %p314
        %p484 = pneg %p311
        %p485 = pneg %p340
        %p486 = pneg %p337
        %s487 = sand.u32 %s327, 1
        %s488 = scalar_lea.sflag [#allocation7], %s487
        %s489 = sand.u32 %s327, 1
        %s490 = scalar_lea.vmem [#allocation10], %s489
        %p491 = scmp.lt.s32.totalorder %s31, 1
        %s492 = scalar_select %p491, %s31, 1
        %s493 = smul.addr %s492, 8
        %s494 = smul.addr %s493, 8
        %s495 = scalar_lea.vmem %s0, %s494
        %p496 = scmp.lt.s32.totalorder %s31, 1
        %s497 = scalar_select %p496, %s31, 1
        %s498 = smul.addr %s497, 8
        %s499 = smul.addr %s498, 8
        %s500 = scalar_lea.vmem %s1, %s499
        %p501 = scmp.lt.s32.totalorder %s31, 1
        %s502 = scalar_select %p501, %s31, 1
        %s503 = scalar_lea.vmem %s2, %s502
        %v504 = vld [vmem:[%s500] sm:$0xff]
        %v505 = vld [vmem:[%s500 + $0x8] sm:$0xff]
        %v506 = vld [vmem:[%s500 + $0x10] sm:$0xff]
        %v507 = vld [vmem:[%s500 + $0x18] sm:$0xff]
        %v508 = vld [vmem:[%s500 + $0x20] sm:$0xff]
        %v509 = vld [vmem:[%s500 + $0x28] sm:$0xff]
        %v510 = vld [vmem:[%s500 + $0x30] sm:$0xff]
        %v511 = vld [vmem:[%s500 + $0x38] sm:$0xff]
        %513 = vset.pattern.permute.xlu0 0
        %514 = vperm.xlu0 %513, %v504
        %v515 = vpop.permute.xlu0 %514
        %518 = vset.pattern.permute.xlu0 0
        %519 = vperm.xlu0 %518, %v505
        %v520 = vpop.permute.xlu0 %519
        %523 = vset.pattern.permute.xlu0 0
        %524 = vperm.xlu0 %523, %v506
        %v525 = vpop.permute.xlu0 %524
        %528 = vset.pattern.permute.xlu0 0
        %529 = vperm.xlu0 %528, %v507
        %v530 = vpop.permute.xlu0 %529
        %533 = vset.pattern.permute.xlu0 0
        %534 = vperm.xlu0 %533, %v508
        %v535 = vpop.permute.xlu0 %534
        %538 = vset.pattern.permute.xlu0 0
        %539 = vperm.xlu0 %538, %v509
        %v540 = vpop.permute.xlu0 %539
        %543 = vset.pattern.permute.xlu0 0
        %544 = vperm.xlu0 %543, %v510
        %v545 = vpop.permute.xlu0 %544
        %548 = vset.pattern.permute.xlu0 0
        %549 = vperm.xlu0 %548, %v511
        %v550 = vpop.permute.xlu0 %549
        %v552 = vld [vmem:[%s503] sm:$0x1]
        %553 = vst [vmem:[#allocation2] sm:$0xff] 0.0
        %554 = vst [vmem:[#allocation2 + $0x8] sm:$0xff] 0.0
        %555 = vst [vmem:[#allocation2 + $0x50] sm:$0x1] 0.0
        %v556 = vld [vmem:[%s495] sm:$0xff]
        %v557 = vld [vmem:[%s495 + $0x8] sm:$0xff]
        %v558 = vld [vmem:[%s495 + $0x10] sm:$0xff]
        %v559 = vld [vmem:[%s495 + $0x18] sm:$0xff]
        %v560 = vld [vmem:[%s495 + $0x20] sm:$0xff]
        %v561 = vld [vmem:[%s495 + $0x28] sm:$0xff]
        %v562 = vld [vmem:[%s495 + $0x30] sm:$0xff]
        %v563 = vld [vmem:[%s495 + $0x38] sm:$0xff]
        %564 = vst [vmem:[#allocation2 + $0x10] sm:$0xff] %v556
        %565 = vst [vmem:[#allocation2 + $0x18] sm:$0xff] %v557
        %566 = vst [vmem:[#allocation2 + $0x20] sm:$0xff] %v558
        %567 = vst [vmem:[#allocation2 + $0x28] sm:$0xff] %v559
        %568 = vst [vmem:[#allocation2 + $0x30] sm:$0xff] %v560
        %569 = vst [vmem:[#allocation2 + $0x38] sm:$0xff] %v561
        %570 = vst [vmem:[#allocation2 + $0x40] sm:$0xff] %v562
        %571 = vst [vmem:[#allocation2 + $0x48] sm:$0xff] %v563
        %572 = vst [vmem:[#allocation3] sm:$0xff] 0.0
        %573 = vst [vmem:[#allocation3 + $0x8] sm:$0xff] 0.0
        %574 = vst [vmem:[#allocation3 + $0x50] sm:$0x1] 0.0
        %v575 = vld [vmem:[#allocation2 + $0xf] sm:$0xff]
        %v576 = vld [vmem:[#allocation2 + $0x17] sm:$0xff]
        %v577 = vld [vmem:[#allocation2 + $0x1f] sm:$0xff]
        %v578 = vld [vmem:[#allocation2 + $0x27] sm:$0xff]
        %v579 = vld [vmem:[#allocation2 + $0x2f] sm:$0xff]
        %v580 = vld [vmem:[#allocation2 + $0x37] sm:$0xff]
        %v581 = vld [vmem:[#allocation2 + $0x3f] sm:$0xff]
        %v582 = vld [vmem:[#allocation2 + $0x47] sm:$0xff]
        %v583 = vld [vmem:[#allocation5] sm:$0xff]
        %v584 = vld [vmem:[#allocation5 + $0x8] sm:$0xff]
        %v585 = vld [vmem:[#allocation5 + $0x10] sm:$0xff]
        %v586 = vld [vmem:[#allocation5 + $0x18] sm:$0xff]
        %v587 = vld [vmem:[#allocation5 + $0x20] sm:$0xff]
        %v588 = vld [vmem:[#allocation5 + $0x28] sm:$0xff]
        %v589 = vld [vmem:[#allocation5 + $0x30] sm:$0xff]
        %v590 = vld [vmem:[#allocation5 + $0x38] sm:$0xff]
        %v591 = vld [vmem:[#allocation5 + $0x40] sm:$0xff]
        %v592 = vld [vmem:[#allocation5 + $0x48] sm:$0xff]
        %v593 = vld [vmem:[#allocation5 + $0x50] sm:$0xff]
        %v594 = vld [vmem:[#allocation5 + $0x58] sm:$0xff]
        %v595 = vld [vmem:[#allocation5 + $0x60] sm:$0xff]
        %v596 = vld [vmem:[#allocation5 + $0x68] sm:$0xff]
        %v597 = vld [vmem:[#allocation5 + $0x70] sm:$0xff]
        %v598 = vld [vmem:[#allocation5 + $0x78] sm:$0xff]
        %v599 = vld [vmem:[#allocation2 + $0x10] sm:$0xff]
        %v600 = vld [vmem:[#allocation2 + $0x18] sm:$0xff]
        %v601 = vld [vmem:[#allocation2 + $0x20] sm:$0xff]
        %v602 = vld [vmem:[#allocation2 + $0x28] sm:$0xff]
        %v603 = vld [vmem:[#allocation2 + $0x30] sm:$0xff]
        %v604 = vld [vmem:[#allocation2 + $0x38] sm:$0xff]
        %v605 = vld [vmem:[#allocation2 + $0x40] sm:$0xff]
        %v606 = vld [vmem:[#allocation2 + $0x48] sm:$0xff]
        %s607 = scalar_lea.vmem [#allocation5], 128
        %v608 = vld [vmem:[%s607] sm:$0xff]
        %v609 = vld [vmem:[%s607 + $0x8] sm:$0xff]
        %v610 = vld [vmem:[%s607 + $0x10] sm:$0xff]
        %v611 = vld [vmem:[%s607 + $0x18] sm:$0xff]
        %v612 = vld [vmem:[%s607 + $0x20] sm:$0xff]
        %v613 = vld [vmem:[%s607 + $0x28] sm:$0xff]
        %v614 = vld [vmem:[%s607 + $0x30] sm:$0xff]
        %v615 = vld [vmem:[%s607 + $0x38] sm:$0xff]
        %v616 = vld [vmem:[%s607 + $0x40] sm:$0xff]
        %v617 = vld [vmem:[%s607 + $0x48] sm:$0xff]
        %v618 = vld [vmem:[%s607 + $0x50] sm:$0xff]
        %v619 = vld [vmem:[%s607 + $0x58] sm:$0xff]
        %v620 = vld [vmem:[%s607 + $0x60] sm:$0xff]
        %v621 = vld [vmem:[%s607 + $0x68] sm:$0xff]
        %v622 = vld [vmem:[%s607 + $0x70] sm:$0xff]
        %v623 = vld [vmem:[%s607 + $0x78] sm:$0xff]
        %624 = vmatprep.subr.mxu0 0.0
        %625 = vmatpush1.msra.mxu0 %v623
        %626 = vmatprep.subr.mxu0 0.0
        %627 = vmatpush1.msra.mxu0 %v622
        %628 = vmatprep.subr.mxu0 0.0
        %629 = vmatpush1.msra.mxu0 %v621
        %630 = vmatprep.subr.mxu0 0.0
        %631 = vmatpush1.msra.mxu0 %v620
        %632 = vmatprep.subr.mxu0 0.0
        %633 = vmatpush1.msra.mxu0 %v619
        %634 = vmatprep.subr.mxu0 0.0
        %635 = vmatpush1.msra.mxu0 %v618
        %636 = vmatprep.subr.mxu0 0.0
        %637 = vmatpush1.msra.mxu0 %v617
        %638 = vmatprep.subr.mxu0 0.0
        %639 = vmatpush1.msra.mxu0 %v616
        %640 = vmatprep.subr.mxu0 0.0
        %641 = vmatpush1.msra.mxu0 %v615
        %642 = vmatprep.subr.mxu0 0.0
        %643 = vmatpush1.msra.mxu0 %v614
        %644 = vmatprep.subr.mxu0 0.0
        %645 = vmatpush1.msra.mxu0 %v613
        %646 = vmatprep.subr.mxu0 0.0
        %647 = vmatpush1.msra.mxu0 %v612
        %648 = vmatprep.subr.mxu0 0.0
        %649 = vmatpush1.msra.mxu0 %v611
        %650 = vmatprep.subr.mxu0 0.0
        %651 = vmatpush1.msra.mxu0 %v610
        %652 = vmatprep.subr.mxu0 0.0
        %653 = vmatpush1.msra.mxu0 %v609
        %654 = vmatprep.subr.mxu0 0.0
        %655 = vmatpush1.msra.mxu0 %v608
        %656 = vmatprep.subr.mxu0 0.0
        %657 = vmatpush2.msra.mxu0 0.0
        %658 = vmatprep.subr.mxu0 0.0
        %659 = vmatpush2.msra.mxu0 0.0
        %660 = vmatprep.subr.mxu0 0.0
        %661 = vmatpush2.msra.mxu0 0.0
        %662 = vmatprep.subr.mxu0 0.0
        %663 = vmatpush2.msra.mxu0 0.0
        %664 = vmatprep.subr.mxu0 0.0
        %665 = vmatpush2.msra.mxu0 0.0
        %666 = vmatprep.subr.mxu0 0.0
        %667 = vmatpush2.msra.mxu0 0.0
        %668 = vmatprep.subr.mxu0 0.0
        %669 = vmatpush2.msra.mxu0 0.0
        %670 = vmatprep.subr.mxu0 0.0
        %671 = vmatpush2.msra.mxu0 0.0
        %672 = vmatprep.subr.mxu0 0.0
        %673 = vmatpush2.msra.mxu0 0.0
        %674 = vmatprep.subr.mxu0 0.0
        %675 = vmatpush2.msra.mxu0 0.0
        %676 = vmatprep.subr.mxu0 0.0
        %677 = vmatpush2.msra.mxu0 0.0
        %678 = vmatprep.subr.mxu0 0.0
        %679 = vmatpush2.msra.mxu0 0.0
        %680 = vmatprep.subr.mxu0 0.0
        %681 = vmatpush2.msra.mxu0 0.0
        %682 = vmatprep.subr.mxu0 0.0
        %683 = vmatpush2.msra.mxu0 0.0
        %684 = vmatprep.subr.mxu0 0.0
        %685 = vmatpush2.msra.mxu0 0.0
        %686 = vmatprep.subr.mxu0 0.0
        %687 = vmatpush2.msra.mxu0 0.0
        %688 = vmatprep.mubr.f32.mxu0 0.0
        %689 = vmatmul.mubr.f32.gmra.mxu0 %v599
        %v690 = vpop.f32.mrf.mxu0
        %v691 = vadd.f32 0.0, %v690
        %v692 = vpop.f32.mrf.mxu0
        %693 = vmatprep.mubr.f32.mxu0 0.0
        %694 = vmatmul.mubr.f32.gmra.mxu0 %v600
        %v695 = vpop.f32.mrf.mxu0
        %v696 = vadd.f32 0.0, %v695
        %v697 = vpop.f32.mrf.mxu0
        %698 = vmatprep.mubr.f32.mxu0 0.0
        %699 = vmatmul.mubr.f32.gmra.mxu0 %v601
        %v700 = vpop.f32.mrf.mxu0
        %v701 = vadd.f32 0.0, %v700
        %v702 = vpop.f32.mrf.mxu0
        %703 = vmatprep.mubr.f32.mxu0 0.0
        %704 = vmatmul.mubr.f32.gmra.mxu0 %v602
        %v705 = vpop.f32.mrf.mxu0
        %v706 = vadd.f32 0.0, %v705
        %v707 = vpop.f32.mrf.mxu0
        %708 = vmatprep.mubr.f32.mxu0 0.0
        %709 = vmatmul.mubr.f32.gmra.mxu0 %v603
        %v710 = vpop.f32.mrf.mxu0
        %v711 = vadd.f32 0.0, %v710
        %v712 = vpop.f32.mrf.mxu0
        %713 = vmatprep.mubr.f32.mxu0 0.0
        %714 = vmatmul.mubr.f32.gmra.mxu0 %v604
        %v715 = vpop.f32.mrf.mxu0
        %v716 = vadd.f32 0.0, %v715
        %v717 = vpop.f32.mrf.mxu0
        %718 = vmatprep.mubr.f32.mxu0 0.0
        %719 = vmatmul.mubr.f32.gmra.mxu0 %v605
        %v720 = vpop.f32.mrf.mxu0
        %v721 = vadd.f32 0.0, %v720
        %v722 = vpop.f32.mrf.mxu0
        %723 = vmatprep.mubr.f32.mxu0 0.0
        %724 = vmatmul.mubr.f32.gmra.mxu0 %v606
        %v725 = vpop.f32.mrf.mxu0
        %v726 = vadd.f32 0.0, %v725
        %v727 = vpop.f32.mrf.mxu0
        %728 = vdwg.mxu0
        %729 = vmatprep.subr.mxu0 0.0
        %730 = vmatpush1.msra.mxu0 %v598
        %731 = vmatprep.subr.mxu0 0.0
        %732 = vmatpush1.msra.mxu0 %v597
        %733 = vmatprep.subr.mxu0 0.0
        %734 = vmatpush1.msra.mxu0 %v596
        %735 = vmatprep.subr.mxu0 0.0
        %736 = vmatpush1.msra.mxu0 %v595
        %737 = vmatprep.subr.mxu0 0.0
        %738 = vmatpush1.msra.mxu0 %v594
        %739 = vmatprep.subr.mxu0 0.0
        %740 = vmatpush1.msra.mxu0 %v593
        %741 = vmatprep.subr.mxu0 0.0
        %742 = vmatpush1.msra.mxu0 %v592
        %743 = vmatprep.subr.mxu0 0.0
        %744 = vmatpush1.msra.mxu0 %v591
        %745 = vmatprep.subr.mxu0 0.0
        %746 = vmatpush1.msra.mxu0 %v590
        %747 = vmatprep.subr.mxu0 0.0
        %748 = vmatpush1.msra.mxu0 %v589
        %749 = vmatprep.subr.mxu0 0.0
        %750 = vmatpush1.msra.mxu0 %v588
        %751 = vmatprep.subr.mxu0 0.0
        %752 = vmatpush1.msra.mxu0 %v587
        %753 = vmatprep.subr.mxu0 0.0
        %754 = vmatpush1.msra.mxu0 %v586
        %755 = vmatprep.subr.mxu0 0.0
        %756 = vmatpush1.msra.mxu0 %v585
        %757 = vmatprep.subr.mxu0 0.0
        %758 = vmatpush1.msra.mxu0 %v584
        %759 = vmatprep.subr.mxu0 0.0
        %760 = vmatpush1.msra.mxu0 %v583
        %761 = vmatprep.subr.mxu0 0.0
        %762 = vmatpush2.msra.mxu0 0.0
        %763 = vmatprep.subr.mxu0 0.0
        %764 = vmatpush2.msra.mxu0 0.0
        %765 = vmatprep.subr.mxu0 0.0
        %766 = vmatpush2.msra.mxu0 0.0
        %767 = vmatprep.subr.mxu0 0.0
        %768 = vmatpush2.msra.mxu0 0.0
        %769 = vmatprep.subr.mxu0 0.0
        %770 = vmatpush2.msra.mxu0 0.0
        %771 = vmatprep.subr.mxu0 0.0
        %772 = vmatpush2.msra.mxu0 0.0
        %773 = vmatprep.subr.mxu0 0.0
        %774 = vmatpush2.msra.mxu0 0.0
        %775 = vmatprep.subr.mxu0 0.0
        %776 = vmatpush2.msra.mxu0 0.0
        %777 = vmatprep.subr.mxu0 0.0
        %778 = vmatpush2.msra.mxu0 0.0
        %779 = vmatprep.subr.mxu0 0.0
        %780 = vmatpush2.msra.mxu0 0.0
        %781 = vmatprep.subr.mxu0 0.0
        %782 = vmatpush2.msra.mxu0 0.0
        %783 = vmatprep.subr.mxu0 0.0
        %784 = vmatpush2.msra.mxu0 0.0
        %785 = vmatprep.subr.mxu0 0.0
        %786 = vmatpush2.msra.mxu0 0.0
        %787 = vmatprep.subr.mxu0 0.0
        %788 = vmatpush2.msra.mxu0 0.0
        %789 = vmatprep.subr.mxu0 0.0
        %790 = vmatpush2.msra.mxu0 0.0
        %791 = vmatprep.subr.mxu0 0.0
        %792 = vmatpush2.msra.mxu0 0.0
        %793 = vmatprep.mubr.f32.mxu0 0.0
        %794 = vmatmul.mubr.f32.gmra.mxu0 %v575
        %v795 = vpop.f32.mrf.mxu0
        %v796 = vadd.f32 %v691, %v795
        %v797 = vpop.f32.mrf.mxu0
        %798 = vmatprep.mubr.f32.mxu0 0.0
        %799 = vmatmul.mubr.f32.gmra.mxu0 %v576
        %v800 = vpop.f32.mrf.mxu0
        %v801 = vadd.f32 %v696, %v800
        %v802 = vpop.f32.mrf.mxu0
        %803 = vmatprep.mubr.f32.mxu0 0.0
        %804 = vmatmul.mubr.f32.gmra.mxu0 %v577
        %v805 = vpop.f32.mrf.mxu0
        %v806 = vadd.f32 %v701, %v805
        %v807 = vpop.f32.mrf.mxu0
        %808 = vmatprep.mubr.f32.mxu0 0.0
        %809 = vmatmul.mubr.f32.gmra.mxu0 %v578
        %v810 = vpop.f32.mrf.mxu0
        %v811 = vadd.f32 %v706, %v810
        %v812 = vpop.f32.mrf.mxu0
        %813 = vmatprep.mubr.f32.mxu0 0.0
        %814 = vmatmul.mubr.f32.gmra.mxu0 %v579
        %v815 = vpop.f32.mrf.mxu0
        %v816 = vadd.f32 %v711, %v815
        %v817 = vpop.f32.mrf.mxu0
        %818 = vmatprep.mubr.f32.mxu0 0.0
        %819 = vmatmul.mubr.f32.gmra.mxu0 %v580
        %v820 = vpop.f32.mrf.mxu0
        %v821 = vadd.f32 %v716, %v820
        %v822 = vpop.f32.mrf.mxu0
        %823 = vmatprep.mubr.f32.mxu0 0.0
        %824 = vmatmul.mubr.f32.gmra.mxu0 %v581
        %v825 = vpop.f32.mrf.mxu0
        %v826 = vadd.f32 %v721, %v825
        %v827 = vpop.f32.mrf.mxu0
        %828 = vmatprep.mubr.f32.mxu0 0.0
        %829 = vmatmul.mubr.f32.gmra.mxu0 %v582
        %v830 = vpop.f32.mrf.mxu0
        %v831 = vadd.f32 %v726, %v830
        %v832 = vpop.f32.mrf.mxu0
        %833 = vdwg.mxu0
        %v834 = vld [vmem:[#allocation2 + $0x11] sm:$0xff]
        %v835 = vld [vmem:[#allocation2 + $0x19] sm:$0xff]
        %v836 = vld [vmem:[#allocation2 + $0x21] sm:$0xff]
        %v837 = vld [vmem:[#allocation2 + $0x29] sm:$0xff]
        %v838 = vld [vmem:[#allocation2 + $0x31] sm:$0xff]
        %v839 = vld [vmem:[#allocation2 + $0x39] sm:$0xff]
        %v840 = vld [vmem:[#allocation2 + $0x41] sm:$0xff]
        %v841 = vld [vmem:[#allocation2 + $0x49] sm:$0xff]
        %s842 = scalar_lea.vmem [#allocation5], 256
        %v843 = vld [vmem:[%s842] sm:$0xff]
        %v844 = vld [vmem:[%s842 + $0x8] sm:$0xff]
        %v845 = vld [vmem:[%s842 + $0x10] sm:$0xff]
        %v846 = vld [vmem:[%s842 + $0x18] sm:$0xff]
        %v847 = vld [vmem:[%s842 + $0x20] sm:$0xff]
        %v848 = vld [vmem:[%s842 + $0x28] sm:$0xff]
        %v849 = vld [vmem:[%s842 + $0x30] sm:$0xff]
        %v850 = vld [vmem:[%s842 + $0x38] sm:$0xff]
        %v851 = vld [vmem:[%s842 + $0x40] sm:$0xff]
        %v852 = vld [vmem:[%s842 + $0x48] sm:$0xff]
        %v853 = vld [vmem:[%s842 + $0x50] sm:$0xff]
        %v854 = vld [vmem:[%s842 + $0x58] sm:$0xff]
        %v855 = vld [vmem:[%s842 + $0x60] sm:$0xff]
        %v856 = vld [vmem:[%s842 + $0x68] sm:$0xff]
        %v857 = vld [vmem:[%s842 + $0x70] sm:$0xff]
        %v858 = vld [vmem:[%s842 + $0x78] sm:$0xff]
        %859 = vmatprep.subr.mxu0 0.0
        %860 = vmatpush1.msra.mxu0 %v858
        %861 = vmatprep.subr.mxu0 0.0
        %862 = vmatpush1.msra.mxu0 %v857
        %863 = vmatprep.subr.mxu0 0.0
        %864 = vmatpush1.msra.mxu0 %v856
        %865 = vmatprep.subr.mxu0 0.0
        %866 = vmatpush1.msra.mxu0 %v855
        %867 = vmatprep.subr.mxu0 0.0
        %868 = vmatpush1.msra.mxu0 %v854
        %869 = vmatprep.subr.mxu0 0.0
        %870 = vmatpush1.msra.mxu0 %v853
        %871 = vmatprep.subr.mxu0 0.0
        %872 = vmatpush1.msra.mxu0 %v852
        %873 = vmatprep.subr.mxu0 0.0
        %874 = vmatpush1.msra.mxu0 %v851
        %875 = vmatprep.subr.mxu0 0.0
        %876 = vmatpush1.msra.mxu0 %v850
        %877 = vmatprep.subr.mxu0 0.0
        %878 = vmatpush1.msra.mxu0 %v849
        %879 = vmatprep.subr.mxu0 0.0
        %880 = vmatpush1.msra.mxu0 %v848
        %881 = vmatprep.subr.mxu0 0.0
        %882 = vmatpush1.msra.mxu0 %v847
        %883 = vmatprep.subr.mxu0 0.0
        %884 = vmatpush1.msra.mxu0 %v846
        %885 = vmatprep.subr.mxu0 0.0
        %886 = vmatpush1.msra.mxu0 %v845
        %887 = vmatprep.subr.mxu0 0.0
        %888 = vmatpush1.msra.mxu0 %v844
        %889 = vmatprep.subr.mxu0 0.0
        %890 = vmatpush1.msra.mxu0 %v843
        %891 = vmatprep.subr.mxu0 0.0
        %892 = vmatpush2.msra.mxu0 0.0
        %893 = vmatprep.subr.mxu0 0.0
        %894 = vmatpush2.msra.mxu0 0.0
        %895 = vmatprep.subr.mxu0 0.0
        %896 = vmatpush2.msra.mxu0 0.0
        %897 = vmatprep.subr.mxu0 0.0
        %898 = vmatpush2.msra.mxu0 0.0
        %899 = vmatprep.subr.mxu0 0.0
        %900 = vmatpush2.msra.mxu0 0.0
        %901 = vmatprep.subr.mxu0 0.0
        %902 = vmatpush2.msra.mxu0 0.0
        %903 = vmatprep.subr.mxu0 0.0
        %904 = vmatpush2.msra.mxu0 0.0
        %905 = vmatprep.subr.mxu0 0.0
        %906 = vmatpush2.msra.mxu0 0.0
        %907 = vmatprep.subr.mxu0 0.0
        %908 = vmatpush2.msra.mxu0 0.0
        %909 = vmatprep.subr.mxu0 0.0
        %910 = vmatpush2.msra.mxu0 0.0
        %911 = vmatprep.subr.mxu0 0.0
        %912 = vmatpush2.msra.mxu0 0.0
        %913 = vmatprep.subr.mxu0 0.0
        %914 = vmatpush2.msra.mxu0 0.0
        %915 = vmatprep.subr.mxu0 0.0
        %916 = vmatpush2.msra.mxu0 0.0
        %917 = vmatprep.subr.mxu0 0.0
        %918 = vmatpush2.msra.mxu0 0.0
        %919 = vmatprep.subr.mxu0 0.0
        %920 = vmatpush2.msra.mxu0 0.0
        %921 = vmatprep.subr.mxu0 0.0
        %922 = vmatpush2.msra.mxu0 0.0
        %923 = vmatprep.mubr.f32.mxu0 0.0
        %924 = vmatmul.mubr.f32.gmra.mxu0 %v834
        %v925 = vpop.f32.mrf.mxu0
        %v926 = vadd.f32 0.0, %v925
        %v927 = vpop.f32.mrf.mxu0
        %928 = vmatprep.mubr.f32.mxu0 0.0
        %929 = vmatmul.mubr.f32.gmra.mxu0 %v835
        %v930 = vpop.f32.mrf.mxu0
        %v931 = vadd.f32 0.0, %v930
        %v932 = vpop.f32.mrf.mxu0
        %933 = vmatprep.mubr.f32.mxu0 0.0
        %934 = vmatmul.mubr.f32.gmra.mxu0 %v836
        %v935 = vpop.f32.mrf.mxu0
        %v936 = vadd.f32 0.0, %v935
        %v937 = vpop.f32.mrf.mxu0
        %938 = vmatprep.mubr.f32.mxu0 0.0
        %939 = vmatmul.mubr.f32.gmra.mxu0 %v837
        %v940 = vpop.f32.mrf.mxu0
        %v941 = vadd.f32 0.0, %v940
        %v942 = vpop.f32.mrf.mxu0
        %943 = vmatprep.mubr.f32.mxu0 0.0
        %944 = vmatmul.mubr.f32.gmra.mxu0 %v838
        %v945 = vpop.f32.mrf.mxu0
        %v946 = vadd.f32 0.0, %v945
        %v947 = vpop.f32.mrf.mxu0
        %948 = vmatprep.mubr.f32.mxu0 0.0
        %949 = vmatmul.mubr.f32.gmra.mxu0 %v839
        %v950 = vpop.f32.mrf.mxu0
        %v951 = vadd.f32 0.0, %v950
        %v952 = vpop.f32.mrf.mxu0
        %953 = vmatprep.mubr.f32.mxu0 0.0
        %954 = vmatmul.mubr.f32.gmra.mxu0 %v840
        %v955 = vpop.f32.mrf.mxu0
        %v956 = vadd.f32 0.0, %v955
        %v957 = vpop.f32.mrf.mxu0
        %958 = vmatprep.mubr.f32.mxu0 0.0
        %959 = vmatmul.mubr.f32.gmra.mxu0 %v841
        %v960 = vpop.f32.mrf.mxu0
        %v961 = vadd.f32 0.0, %v960
        %v962 = vpop.f32.mrf.mxu0
        %963 = vdwg.mxu0
        %v964 = vadd.f32 %v796, %v926
        %v965 = vadd.f32 %v801, %v931
        %v966 = vadd.f32 %v806, %v936
        %v967 = vadd.f32 %v811, %v941
        %v968 = vadd.f32 %v816, %v946
        %v969 = vadd.f32 %v821, %v951
        %v970 = vadd.f32 %v826, %v956
        %v971 = vadd.f32 %v831, %v961
        %v972 = vld [vmem:[%s4] sm:$0x1]
        %v974 = vlaneseq
        %v975 = vshrl.u32 %v974, 7
        %v976 = vsub.s32 0, %v975
        %v977 = vrot.slane %v972, %v976
        %v979 = vadd.f32 %v964, %v977
        %v980 = vadd.f32 %v965, %v977
        %v981 = vadd.f32 %v966, %v977
        %v982 = vadd.f32 %v967, %v977
        %v983 = vadd.f32 %v968, %v977
        %v984 = vadd.f32 %v969, %v977
        %v985 = vadd.f32 %v970, %v977
        %v986 = vadd.f32 %v971, %v977
        %v987 = vmax.f32 %v979, 0.0
        %v988 = vmax.f32 %v980, 0.0
        %v989 = vmax.f32 %v981, 0.0
        %v990 = vmax.f32 %v982, 0.0
        %v991 = vmax.f32 %v983, 0.0
        %v992 = vmax.f32 %v984, 0.0
        %v993 = vmax.f32 %v985, 0.0
        %v994 = vmax.f32 %v986, 0.0
        %995 = vadd.xlane.f32.xlu0 %v987
        %v996 = vpop.xlane.xlu0 %995
        %997 = vadd.xlane.f32.xlu0 %v988
        %v998 = vpop.xlane.xlu0 %997
        %999 = vadd.xlane.f32.xlu0 %v989
        %v1000 = vpop.xlane.xlu0 %999
        %1001 = vadd.xlane.f32.xlu0 %v990
        %v1002 = vpop.xlane.xlu0 %1001
        %1003 = vadd.xlane.f32.xlu0 %v991
        %v1004 = vpop.xlane.xlu0 %1003
        %1005 = vadd.xlane.f32.xlu0 %v992
        %v1006 = vpop.xlane.xlu0 %1005
        %1007 = vadd.xlane.f32.xlu0 %v993
        %v1008 = vpop.xlane.xlu0 %1007
        %1009 = vadd.xlane.f32.xlu0 %v994
        %v1010 = vpop.xlane.xlu0 %1009
        %v1011 = vmul.f32 %v996, 0.0078125
        %v1012 = vmul.f32 %v998, 0.0078125
        %v1013 = vmul.f32 %v1000, 0.0078125
        %v1014 = vmul.f32 %v1002, 0.0078125
        %v1015 = vmul.f32 %v1004, 0.0078125
        %v1016 = vmul.f32 %v1006, 0.0078125
        %v1017 = vmul.f32 %v1008, 0.0078125
        %v1018 = vmul.f32 %v1010, 0.0078125
        %v1019 = vsub.f32 %v987, %v1011
        %v1020 = vsub.f32 %v988, %v1012
        %v1021 = vsub.f32 %v989, %v1013
        %v1022 = vsub.f32 %v990, %v1014
        %v1023 = vsub.f32 %v991, %v1015
        %v1024 = vsub.f32 %v992, %v1016
        %v1025 = vsub.f32 %v993, %v1017
        %v1026 = vsub.f32 %v994, %v1018
        %v1027 = vmul.f32 %v1019, %v1019
        %v1028 = vmul.f32 %v1020, %v1020
        %v1029 = vmul.f32 %v1021, %v1021
        %v1030 = vmul.f32 %v1022, %v1022
        %v1031 = vmul.f32 %v1023, %v1023
        %v1032 = vmul.f32 %v1024, %v1024
        %v1033 = vmul.f32 %v1025, %v1025
        %v1034 = vmul.f32 %v1026, %v1026
        %1035 = vadd.xlane.f32.xlu0 %v1027
        %v1036 = vpop.xlane.xlu0 %1035
        %1037 = vadd.xlane.f32.xlu0 %v1028
        %v1038 = vpop.xlane.xlu0 %1037
        %1039 = vadd.xlane.f32.xlu0 %v1029
        %v1040 = vpop.xlane.xlu0 %1039
        %1041 = vadd.xlane.f32.xlu0 %v1030
        %v1042 = vpop.xlane.xlu0 %1041
        %1043 = vadd.xlane.f32.xlu0 %v1031
        %v1044 = vpop.xlane.xlu0 %1043
        %1045 = vadd.xlane.f32.xlu0 %v1032
        %v1046 = vpop.xlane.xlu0 %1045
        %1047 = vadd.xlane.f32.xlu0 %v1033
        %v1048 = vpop.xlane.xlu0 %1047
        %1049 = vadd.xlane.f32.xlu0 %v1034
        %v1050 = vpop.xlane.xlu0 %1049
        %v1051 = vmul.f32 %v1036, 0.0078125
        %v1052 = vmul.f32 %v1038, 0.0078125
        %v1053 = vmul.f32 %v1040, 0.0078125
        %v1054 = vmul.f32 %v1042, 0.0078125
        %v1055 = vmul.f32 %v1044, 0.0078125
        %v1056 = vmul.f32 %v1046, 0.0078125
        %v1057 = vmul.f32 %v1048, 0.0078125
        %v1058 = vmul.f32 %v1050, 0.0078125
        %v1059 = vadd.f32 %v1051, 1e-12
        %v1060 = vadd.f32 %v1052, 1e-12
        %v1061 = vadd.f32 %v1053, 1e-12
        %v1062 = vadd.f32 %v1054, 1e-12
        %v1063 = vadd.f32 %v1055, 1e-12
        %v1064 = vadd.f32 %v1056, 1e-12
        %v1065 = vadd.f32 %v1057, 1e-12
        %v1066 = vadd.f32 %v1058, 1e-12
        %v1067 = vrsqrt.pop %v1059
        %v1068 = vrsqrt.pop %v1060
        %v1069 = vrsqrt.pop %v1061
        %v1070 = vrsqrt.pop %v1062
        %v1071 = vrsqrt.pop %v1063
        %v1072 = vrsqrt.pop %v1064
        %v1073 = vrsqrt.pop %v1065
        %v1074 = vrsqrt.pop %v1066
        %v1075 = vmul.f32 %v1019, %v1067
        %v1076 = vmul.f32 %v1020, %v1068
        %v1077 = vmul.f32 %v1021, %v1069
        %v1078 = vmul.f32 %v1022, %v1070
        %v1079 = vmul.f32 %v1023, %v1071
        %v1080 = vmul.f32 %v1024, %v1072
        %v1081 = vmul.f32 %v1025, %v1073
        %v1082 = vmul.f32 %v1026, %v1074
        %v1083 = vld [vmem:[%s5] sm:$0x1]
        %v1085 = vlaneseq
        %v1086 = vshrl.u32 %v1085, 7
        %v1087 = vsub.s32 0, %v1086
        %v1088 = vrot.slane %v1083, %v1087
        %v1090 = vmul.f32 %v1075, %v1088
        %v1091 = vmul.f32 %v1076, %v1088
        %v1092 = vmul.f32 %v1077, %v1088
        %v1093 = vmul.f32 %v1078, %v1088
        %v1094 = vmul.f32 %v1079, %v1088
        %v1095 = vmul.f32 %v1080, %v1088
        %v1096 = vmul.f32 %v1081, %v1088
        %v1097 = vmul.f32 %v1082, %v1088
        %v1098 = vld [vmem:[%s6] sm:$0x1]
        %v1100 = vlaneseq
        %v1101 = vshrl.u32 %v1100, 7
        %v1102 = vsub.s32 0, %v1101
        %v1103 = vrot.slane %v1098, %v1102
        %v1105 = vadd.f32 %v1090, %v1103
        %v1106 = vadd.f32 %v1091, %v1103
        %v1107 = vadd.f32 %v1092, %v1103
        %v1108 = vadd.f32 %v1093, %v1103
        %v1109 = vadd.f32 %v1094, %v1103
        %v1110 = vadd.f32 %v1095, %v1103
        %v1111 = vadd.f32 %v1096, %v1103
        %v1112 = vadd.f32 %v1097, %v1103
        %v1113 = vmul.f32 %v1105, %v515
        %v1114 = vmul.f32 %v1106, %v520
        %v1115 = vmul.f32 %v1107, %v525
        %v1116 = vmul.f32 %v1108, %v530
        %v1117 = vmul.f32 %v1109, %v535
        %v1118 = vmul.f32 %v1110, %v540
        %v1119 = vmul.f32 %v1111, %v545
        %v1120 = vmul.f32 %v1112, %v550
        %1121 = vst [vmem:[#allocation3 + $0x10] sm:$0xff] %v1113
        %1122 = vst [vmem:[#allocation3 + $0x18] sm:$0xff] %v1114
        %1123 = vst [vmem:[#allocation3 + $0x20] sm:$0xff] %v1115
        %1124 = vst [vmem:[#allocation3 + $0x28] sm:$0xff] %v1116
        %1125 = vst [vmem:[#allocation3 + $0x30] sm:$0xff] %v1117
        %1126 = vst [vmem:[#allocation3 + $0x38] sm:$0xff] %v1118
        %1127 = vst [vmem:[#allocation3 + $0x40] sm:$0xff] %v1119
        %1128 = vst [vmem:[#allocation3 + $0x48] sm:$0xff] %v1120
        %v1129 = vld [vmem:[#allocation3 + $0xf] sm:$0xff]
        %v1130 = vld [vmem:[#allocation3 + $0x17] sm:$0xff]
        %v1131 = vld [vmem:[#allocation3 + $0x1f] sm:$0xff]
        %v1132 = vld [vmem:[#allocation3 + $0x27] sm:$0xff]
        %v1133 = vld [vmem:[#allocation3 + $0x2f] sm:$0xff]
        %v1134 = vld [vmem:[#allocation3 + $0x37] sm:$0xff]
        %v1135 = vld [vmem:[#allocation3 + $0x3f] sm:$0xff]
        %v1136 = vld [vmem:[#allocation3 + $0x47] sm:$0xff]
        %v1137 = vld [vmem:[#allocation8] sm:$0xff]
        %v1138 = vld [vmem:[#allocation8 + $0x8] sm:$0xff]
        %v1139 = vld [vmem:[#allocation8 + $0x10] sm:$0xff]
        %v1140 = vld [vmem:[#allocation8 + $0x18] sm:$0xff]
        %v1141 = vld [vmem:[#allocation8 + $0x20] sm:$0xff]
        %v1142 = vld [vmem:[#allocation8 + $0x28] sm:$0xff]
        %v1143 = vld [vmem:[#allocation8 + $0x30] sm:$0xff]
        %v1144 = vld [vmem:[#allocation8 + $0x38] sm:$0xff]
        %v1145 = vld [vmem:[#allocation8 + $0x40] sm:$0xff]
        %v1146 = vld [vmem:[#allocation8 + $0x48] sm:$0xff]
        %v1147 = vld [vmem:[#allocation8 + $0x50] sm:$0xff]
        %v1148 = vld [vmem:[#allocation8 + $0x58] sm:$0xff]
        %v1149 = vld [vmem:[#allocation8 + $0x60] sm:$0xff]
        %v1150 = vld [vmem:[#allocation8 + $0x68] sm:$0xff]
        %v1151 = vld [vmem:[#allocation8 + $0x70] sm:$0xff]
        %v1152 = vld [vmem:[#allocation8 + $0x78] sm:$0xff]
        %v1153 = vld [vmem:[#allocation3 + $0x10] sm:$0xff]
        %v1154 = vld [vmem:[#allocation3 + $0x18] sm:$0xff]
        %v1155 = vld [vmem:[#allocation3 + $0x20] sm:$0xff]
        %v1156 = vld [vmem:[#allocation3 + $0x28] sm:$0xff]
        %v1157 = vld [vmem:[#allocation3 + $0x30] sm:$0xff]
        %v1158 = vld [vmem:[#allocation3 + $0x38] sm:$0xff]
        %v1159 = vld [vmem:[#allocation3 + $0x40] sm:$0xff]
        %v1160 = vld [vmem:[#allocation3 + $0x48] sm:$0xff]
        %s1161 = scalar_lea.vmem [#allocation8], 128
        %v1162 = vld [vmem:[%s1161] sm:$0xff]
        %v1163 = vld [vmem:[%s1161 + $0x8] sm:$0xff]
        %v1164 = vld [vmem:[%s1161 + $0x10] sm:$0xff]
        %v1165 = vld [vmem:[%s1161 + $0x18] sm:$0xff]
        %v1166 = vld [vmem:[%s1161 + $0x20] sm:$0xff]
        %v1167 = vld [vmem:[%s1161 + $0x28] sm:$0xff]
        %v1168 = vld [vmem:[%s1161 + $0x30] sm:$0xff]
        %v1169 = vld [vmem:[%s1161 + $0x38] sm:$0xff]
        %v1170 = vld [vmem:[%s1161 + $0x40] sm:$0xff]
        %v1171 = vld [vmem:[%s1161 + $0x48] sm:$0xff]
        %v1172 = vld [vmem:[%s1161 + $0x50] sm:$0xff]
        %v1173 = vld [vmem:[%s1161 + $0x58] sm:$0xff]
        %v1174 = vld [vmem:[%s1161 + $0x60] sm:$0xff]
        %v1175 = vld [vmem:[%s1161 + $0x68] sm:$0xff]
        %v1176 = vld [vmem:[%s1161 + $0x70] sm:$0xff]
        %v1177 = vld [vmem:[%s1161 + $0x78] sm:$0xff]
        %1178 = vmatprep.subr.mxu0 0.0
        %1179 = vmatpush1.msra.mxu0 %v1177
        %1180 = vmatprep.subr.mxu0 0.0
        %1181 = vmatpush1.msra.mxu0 %v1176
        %1182 = vmatprep.subr.mxu0 0.0
        %1183 = vmatpush1.msra.mxu0 %v1175
        %1184 = vmatprep.subr.mxu0 0.0
        %1185 = vmatpush1.msra.mxu0 %v1174
        %1186 = vmatprep.subr.mxu0 0.0
        %1187 = vmatpush1.msra.mxu0 %v1173
        %1188 = vmatprep.subr.mxu0 0.0
        %1189 = vmatpush1.msra.mxu0 %v1172
        %1190 = vmatprep.subr.mxu0 0.0
        %1191 = vmatpush1.msra.mxu0 %v1171
        %1192 = vmatprep.subr.mxu0 0.0
        %1193 = vmatpush1.msra.mxu0 %v1170
        %1194 = vmatprep.subr.mxu0 0.0
        %1195 = vmatpush1.msra.mxu0 %v1169
        %1196 = vmatprep.subr.mxu0 0.0
        %1197 = vmatpush1.msra.mxu0 %v1168
        %1198 = vmatprep.subr.mxu0 0.0
        %1199 = vmatpush1.msra.mxu0 %v1167
        %1200 = vmatprep.subr.mxu0 0.0
        %1201 = vmatpush1.msra.mxu0 %v1166
        %1202 = vmatprep.subr.mxu0 0.0
        %1203 = vmatpush1.msra.mxu0 %v1165
        %1204 = vmatprep.subr.mxu0 0.0
        %1205 = vmatpush1.msra.mxu0 %v1164
        %1206 = vmatprep.subr.mxu0 0.0
        %1207 = vmatpush1.msra.mxu0 %v1163
        %1208 = vmatprep.subr.mxu0 0.0
        %1209 = vmatpush1.msra.mxu0 %v1162
        %1210 = vmatprep.subr.mxu0 0.0
        %1211 = vmatpush2.msra.mxu0 0.0
        %1212 = vmatprep.subr.mxu0 0.0
        %1213 = vmatpush2.msra.mxu0 0.0
        %1214 = vmatprep.subr.mxu0 0.0
        %1215 = vmatpush2.msra.mxu0 0.0
        %1216 = vmatprep.subr.mxu0 0.0
        %1217 = vmatpush2.msra.mxu0 0.0
        %1218 = vmatprep.subr.mxu0 0.0
        %1219 = vmatpush2.msra.mxu0 0.0
        %1220 = vmatprep.subr.mxu0 0.0
        %1221 = vmatpush2.msra.mxu0 0.0
        %1222 = vmatprep.subr.mxu0 0.0
        %1223 = vmatpush2.msra.mxu0 0.0
        %1224 = vmatprep.subr.mxu0 0.0
        %1225 = vmatpush2.msra.mxu0 0.0
        %1226 = vmatprep.subr.mxu0 0.0
        %1227 = vmatpush2.msra.mxu0 0.0
        %1228 = vmatprep.subr.mxu0 0.0
        %1229 = vmatpush2.msra.mxu0 0.0
        %1230 = vmatprep.subr.mxu0 0.0
        %1231 = vmatpush2.msra.mxu0 0.0
        %1232 = vmatprep.subr.mxu0 0.0
        %1233 = vmatpush2.msra.mxu0 0.0
        %1234 = vmatprep.subr.mxu0 0.0
        %1235 = vmatpush2.msra.mxu0 0.0
        %1236 = vmatprep.subr.mxu0 0.0
        %1237 = vmatpush2.msra.mxu0 0.0
        %1238 = vmatprep.subr.mxu0 0.0
        %1239 = vmatpush2.msra.mxu0 0.0
        %1240 = vmatprep.subr.mxu0 0.0
        %1241 = vmatpush2.msra.mxu0 0.0
        %1242 = vmatprep.mubr.f32.mxu0 0.0
        %1243 = vmatmul.mubr.f32.gmra.mxu0 %v1153
        %v1244 = vpop.f32.mrf.mxu0
        %v1245 = vadd.f32 0.0, %v1244
        %v1246 = vpop.f32.mrf.mxu0
        %1247 = vmatprep.mubr.f32.mxu0 0.0
        %1248 = vmatmul.mubr.f32.gmra.mxu0 %v1154
        %v1249 = vpop.f32.mrf.mxu0
        %v1250 = vadd.f32 0.0, %v1249
        %v1251 = vpop.f32.mrf.mxu0
        %1252 = vmatprep.mubr.f32.mxu0 0.0
        %1253 = vmatmul.mubr.f32.gmra.mxu0 %v1155
        %v1254 = vpop.f32.mrf.mxu0
        %v1255 = vadd.f32 0.0, %v1254
        %v1256 = vpop.f32.mrf.mxu0
        %1257 = vmatprep.mubr.f32.mxu0 0.0
        %1258 = vmatmul.mubr.f32.gmra.mxu0 %v1156
        %v1259 = vpop.f32.mrf.mxu0
        %v1260 = vadd.f32 0.0, %v1259
        %v1261 = vpop.f32.mrf.mxu0
        %1262 = vmatprep.mubr.f32.mxu0 0.0
        %1263 = vmatmul.mubr.f32.gmra.mxu0 %v1157
        %v1264 = vpop.f32.mrf.mxu0
        %v1265 = vadd.f32 0.0, %v1264
        %v1266 = vpop.f32.mrf.mxu0
        %1267 = vmatprep.mubr.f32.mxu0 0.0
        %1268 = vmatmul.mubr.f32.gmra.mxu0 %v1158
        %v1269 = vpop.f32.mrf.mxu0
        %v1270 = vadd.f32 0.0, %v1269
        %v1271 = vpop.f32.mrf.mxu0
        %1272 = vmatprep.mubr.f32.mxu0 0.0
        %1273 = vmatmul.mubr.f32.gmra.mxu0 %v1159
        %v1274 = vpop.f32.mrf.mxu0
        %v1275 = vadd.f32 0.0, %v1274
        %v1276 = vpop.f32.mrf.mxu0
        %1277 = vmatprep.mubr.f32.mxu0 0.0
        %1278 = vmatmul.mubr.f32.gmra.mxu0 %v1160
        %v1279 = vpop.f32.mrf.mxu0
        %v1280 = vadd.f32 0.0, %v1279
        %v1281 = vpop.f32.mrf.mxu0
        %1282 = vdwg.mxu0
        %1283 = vmatprep.subr.mxu0 0.0
        %1284 = vmatpush1.msra.mxu0 %v1152
        %1285 = vmatprep.subr.mxu0 0.0
        %1286 = vmatpush1.msra.mxu0 %v1151
        %1287 = vmatprep.subr.mxu0 0.0
        %1288 = vmatpush1.msra.mxu0 %v1150
        %1289 = vmatprep.subr.mxu0 0.0
        %1290 = vmatpush1.msra.mxu0 %v1149
        %1291 = vmatprep.subr.mxu0 0.0
        %1292 = vmatpush1.msra.mxu0 %v1148
        %1293 = vmatprep.subr.mxu0 0.0
        %1294 = vmatpush1.msra.mxu0 %v1147
        %1295 = vmatprep.subr.mxu0 0.0
        %1296 = vmatpush1.msra.mxu0 %v1146
        %1297 = vmatprep.subr.mxu0 0.0
        %1298 = vmatpush1.msra.mxu0 %v1145
        %1299 = vmatprep.subr.mxu0 0.0
        %1300 = vmatpush1.msra.mxu0 %v1144
        %1301 = vmatprep.subr.mxu0 0.0
        %1302 = vmatpush1.msra.mxu0 %v1143
        %1303 = vmatprep.subr.mxu0 0.0
        %1304 = vmatpush1.msra.mxu0 %v1142
        %1305 = vmatprep.subr.mxu0 0.0
        %1306 = vmatpush1.msra.mxu0 %v1141
        %1307 = vmatprep.subr.mxu0 0.0
        %1308 = vmatpush1.msra.mxu0 %v1140
        %1309 = vmatprep.subr.mxu0 0.0
        %1310 = vmatpush1.msra.mxu0 %v1139
        %1311 = vmatprep.subr.mxu0 0.0
        %1312 = vmatpush1.msra.mxu0 %v1138
        %1313 = vmatprep.subr.mxu0 0.0
        %1314 = vmatpush1.msra.mxu0 %v1137
        %1315 = vmatprep.subr.mxu0 0.0
        %1316 = vmatpush2.msra.mxu0 0.0
        %1317 = vmatprep.subr.mxu0 0.0
        %1318 = vmatpush2.msra.mxu0 0.0
        %1319 = vmatprep.subr.mxu0 0.0
        %1320 = vmatpush2.msra.mxu0 0.0
        %1321 = vmatprep.subr.mxu0 0.0
        %1322 = vmatpush2.msra.mxu0 0.0
        %1323 = vmatprep.subr.mxu0 0.0
        %1324 = vmatpush2.msra.mxu0 0.0
        %1325 = vmatprep.subr.mxu0 0.0
        %1326 = vmatpush2.msra.mxu0 0.0
        %1327 = vmatprep.subr.mxu0 0.0
        %1328 = vmatpush2.msra.mxu0 0.0
        %1329 = vmatprep.subr.mxu0 0.0
        %1330 = vmatpush2.msra.mxu0 0.0
        %1331 = vmatprep.subr.mxu0 0.0
        %1332 = vmatpush2.msra.mxu0 0.0
        %1333 = vmatprep.subr.mxu0 0.0
        %1334 = vmatpush2.msra.mxu0 0.0
        %1335 = vmatprep.subr.mxu0 0.0
        %1336 = vmatpush2.msra.mxu0 0.0
        %1337 = vmatprep.subr.mxu0 0.0
        %1338 = vmatpush2.msra.mxu0 0.0
        %1339 = vmatprep.subr.mxu0 0.0
        %1340 = vmatpush2.msra.mxu0 0.0
        %1341 = vmatprep.subr.mxu0 0.0
        %1342 = vmatpush2.msra.mxu0 0.0
        %1343 = vmatprep.subr.mxu0 0.0
        %1344 = vmatpush2.msra.mxu0 0.0
        %1345 = vmatprep.subr.mxu0 0.0
        %1346 = vmatpush2.msra.mxu0 0.0
        %1347 = vmatprep.mubr.f32.mxu0 0.0
        %1348 = vmatmul.mubr.f32.gmra.mxu0 %v1129
        %v1349 = vpop.f32.mrf.mxu0
        %v1350 = vadd.f32 %v1245, %v1349
        %v1351 = vpop.f32.mrf.mxu0
        %1352 = vmatprep.mubr.f32.mxu0 0.0
        %1353 = vmatmul.mubr.f32.gmra.mxu0 %v1130
        %v1354 = vpop.f32.mrf.mxu0
        %v1355 = vadd.f32 %v1250, %v1354
        %v1356 = vpop.f32.mrf.mxu0
        %1357 = vmatprep.mubr.f32.mxu0 0.0
        %1358 = vmatmul.mubr.f32.gmra.mxu0 %v1131
        %v1359 = vpop.f32.mrf.mxu0
        %v1360 = vadd.f32 %v1255, %v1359
        %v1361 = vpop.f32.mrf.mxu0
        %1362 = vmatprep.mubr.f32.mxu0 0.0
        %1363 = vmatmul.mubr.f32.gmra.mxu0 %v1132
        %v1364 = vpop.f32.mrf.mxu0
        %v1365 = vadd.f32 %v1260, %v1364
        %v1366 = vpop.f32.mrf.mxu0
        %1367 = vmatprep.mubr.f32.mxu0 0.0
        %1368 = vmatmul.mubr.f32.gmra.mxu0 %v1133
        %v1369 = vpop.f32.mrf.mxu0
        %v1370 = vadd.f32 %v1265, %v1369
        %v1371 = vpop.f32.mrf.mxu0
        %1372 = vmatprep.mubr.f32.mxu0 0.0
        %1373 = vmatmul.mubr.f32.gmra.mxu0 %v1134
        %v1374 = vpop.f32.mrf.mxu0
        %v1375 = vadd.f32 %v1270, %v1374
        %v1376 = vpop.f32.mrf.mxu0
        %1377 = vmatprep.mubr.f32.mxu0 0.0
        %1378 = vmatmul.mubr.f32.gmra.mxu0 %v1135
        %v1379 = vpop.f32.mrf.mxu0
        %v1380 = vadd.f32 %v1275, %v1379
        %v1381 = vpop.f32.mrf.mxu0
        %1382 = vmatprep.mubr.f32.mxu0 0.0
        %1383 = vmatmul.mubr.f32.gmra.mxu0 %v1136
        %v1384 = vpop.f32.mrf.mxu0
        %v1385 = vadd.f32 %v1280, %v1384
        %v1386 = vpop.f32.mrf.mxu0
        %1387 = vdwg.mxu0
        %v1388 = vld [vmem:[#allocation3 + $0x11] sm:$0xff]
        %v1389 = vld [vmem:[#allocation3 + $0x19] sm:$0xff]
        %v1390 = vld [vmem:[#allocation3 + $0x21] sm:$0xff]
        %v1391 = vld [vmem:[#allocation3 + $0x29] sm:$0xff]
        %v1392 = vld [vmem:[#allocation3 + $0x31] sm:$0xff]
        %v1393 = vld [vmem:[#allocation3 + $0x39] sm:$0xff]
        %v1394 = vld [vmem:[#allocation3 + $0x41] sm:$0xff]
        %v1395 = vld [vmem:[#allocation3 + $0x49] sm:$0xff]
        %s1396 = scalar_lea.vmem [#allocation8], 256
        %v1397 = vld [vmem:[%s1396] sm:$0xff]
        %v1398 = vld [vmem:[%s1396 + $0x8] sm:$0xff]
        %v1399 = vld [vmem:[%s1396 + $0x10] sm:$0xff]
        %v1400 = vld [vmem:[%s1396 + $0x18] sm:$0xff]
        %v1401 = vld [vmem:[%s1396 + $0x20] sm:$0xff]
        %v1402 = vld [vmem:[%s1396 + $0x28] sm:$0xff]
        %v1403 = vld [vmem:[%s1396 + $0x30] sm:$0xff]
        %v1404 = vld [vmem:[%s1396 + $0x38] sm:$0xff]
        %v1405 = vld [vmem:[%s1396 + $0x40] sm:$0xff]
        %v1406 = vld [vmem:[%s1396 + $0x48] sm:$0xff]
        %v1407 = vld [vmem:[%s1396 + $0x50] sm:$0xff]
        %v1408 = vld [vmem:[%s1396 + $0x58] sm:$0xff]
        %v1409 = vld [vmem:[%s1396 + $0x60] sm:$0xff]
        %v1410 = vld [vmem:[%s1396 + $0x68] sm:$0xff]
        %v1411 = vld [vmem:[%s1396 + $0x70] sm:$0xff]
        %v1412 = vld [vmem:[%s1396 + $0x78] sm:$0xff]
        %1413 = vmatprep.subr.mxu0 0.0
        %1414 = vmatpush1.msra.mxu0 %v1412
        %1415 = vmatprep.subr.mxu0 0.0
        %1416 = vmatpush1.msra.mxu0 %v1411
        %1417 = vmatprep.subr.mxu0 0.0
        %1418 = vmatpush1.msra.mxu0 %v1410
        %1419 = vmatprep.subr.mxu0 0.0
        %1420 = vmatpush1.msra.mxu0 %v1409
        %1421 = vmatprep.subr.mxu0 0.0
        %1422 = vmatpush1.msra.mxu0 %v1408
        %1423 = vmatprep.subr.mxu0 0.0
        %1424 = vmatpush1.msra.mxu0 %v1407
        %1425 = vmatprep.subr.mxu0 0.0
        %1426 = vmatpush1.msra.mxu0 %v1406
        %1427 = vmatprep.subr.mxu0 0.0
        %1428 = vmatpush1.msra.mxu0 %v1405
        %1429 = vmatprep.subr.mxu0 0.0
        %1430 = vmatpush1.msra.mxu0 %v1404
        %1431 = vmatprep.subr.mxu0 0.0
        %1432 = vmatpush1.msra.mxu0 %v1403
        %1433 = vmatprep.subr.mxu0 0.0
        %1434 = vmatpush1.msra.mxu0 %v1402
        %1435 = vmatprep.subr.mxu0 0.0
        %1436 = vmatpush1.msra.mxu0 %v1401
        %1437 = vmatprep.subr.mxu0 0.0
        %1438 = vmatpush1.msra.mxu0 %v1400
        %1439 = vmatprep.subr.mxu0 0.0
        %1440 = vmatpush1.msra.mxu0 %v1399
        %1441 = vmatprep.subr.mxu0 0.0
        %1442 = vmatpush1.msra.mxu0 %v1398
        %1443 = vmatprep.subr.mxu0 0.0
        %1444 = vmatpush1.msra.mxu0 %v1397
        %1445 = vmatprep.subr.mxu0 0.0
        %1446 = vmatpush2.msra.mxu0 0.0
        %1447 = vmatprep.subr.mxu0 0.0
        %1448 = vmatpush2.msra.mxu0 0.0
        %1449 = vmatprep.subr.mxu0 0.0
        %1450 = vmatpush2.msra.mxu0 0.0
        %1451 = vmatprep.subr.mxu0 0.0
        %1452 = vmatpush2.msra.mxu0 0.0
        %1453 = vmatprep.subr.mxu0 0.0
        %1454 = vmatpush2.msra.mxu0 0.0
        %1455 = vmatprep.subr.mxu0 0.0
        %1456 = vmatpush2.msra.mxu0 0.0
        %1457 = vmatprep.subr.mxu0 0.0
        %1458 = vmatpush2.msra.mxu0 0.0
        %1459 = vmatprep.subr.mxu0 0.0
        %1460 = vmatpush2.msra.mxu0 0.0
        %1461 = vmatprep.subr.mxu0 0.0
        %1462 = vmatpush2.msra.mxu0 0.0
        %1463 = vmatprep.subr.mxu0 0.0
        %1464 = vmatpush2.msra.mxu0 0.0
        %1465 = vmatprep.subr.mxu0 0.0
        %1466 = vmatpush2.msra.mxu0 0.0
        %1467 = vmatprep.subr.mxu0 0.0
        %1468 = vmatpush2.msra.mxu0 0.0
        %1469 = vmatprep.subr.mxu0 0.0
        %1470 = vmatpush2.msra.mxu0 0.0
        %1471 = vmatprep.subr.mxu0 0.0
        %1472 = vmatpush2.msra.mxu0 0.0
        %1473 = vmatprep.subr.mxu0 0.0
        %1474 = vmatpush2.msra.mxu0 0.0
        %1475 = vmatprep.subr.mxu0 0.0
        %1476 = vmatpush2.msra.mxu0 0.0
        %1477 = vmatprep.mubr.f32.mxu0 0.0
        %1478 = vmatmul.mubr.f32.gmra.mxu0 %v1388
        %v1479 = vpop.f32.mrf.mxu0
        %v1480 = vadd.f32 0.0, %v1479
        %v1481 = vpop.f32.mrf.mxu0
        %1482 = vmatprep.mubr.f32.mxu0 0.0
        %1483 = vmatmul.mubr.f32.gmra.mxu0 %v1389
        %v1484 = vpop.f32.mrf.mxu0
        %v1485 = vadd.f32 0.0, %v1484
        %v1486 = vpop.f32.mrf.mxu0
        %1487 = vmatprep.mubr.f32.mxu0 0.0
        %1488 = vmatmul.mubr.f32.gmra.mxu0 %v1390
        %v1489 = vpop.f32.mrf.mxu0
        %v1490 = vadd.f32 0.0, %v1489
        %v1491 = vpop.f32.mrf.mxu0
        %1492 = vmatprep.mubr.f32.mxu0 0.0
        %1493 = vmatmul.mubr.f32.gmra.mxu0 %v1391
        %v1494 = vpop.f32.mrf.mxu0
        %v1495 = vadd.f32 0.0, %v1494
        %v1496 = vpop.f32.mrf.mxu0
        %1497 = vmatprep.mubr.f32.mxu0 0.0
        %1498 = vmatmul.mubr.f32.gmra.mxu0 %v1392
        %v1499 = vpop.f32.mrf.mxu0
        %v1500 = vadd.f32 0.0, %v1499
        %v1501 = vpop.f32.mrf.mxu0
        %1502 = vmatprep.mubr.f32.mxu0 0.0
        %1503 = vmatmul.mubr.f32.gmra.mxu0 %v1393
        %v1504 = vpop.f32.mrf.mxu0
        %v1505 = vadd.f32 0.0, %v1504
        %v1506 = vpop.f32.mrf.mxu0
        %1507 = vmatprep.mubr.f32.mxu0 0.0
        %1508 = vmatmul.mubr.f32.gmra.mxu0 %v1394
        %v1509 = vpop.f32.mrf.mxu0
        %v1510 = vadd.f32 0.0, %v1509
        %v1511 = vpop.f32.mrf.mxu0
        %1512 = vmatprep.mubr.f32.mxu0 0.0
        %1513 = vmatmul.mubr.f32.gmra.mxu0 %v1395
        %v1514 = vpop.f32.mrf.mxu0
        %v1515 = vadd.f32 0.0, %v1514
        %v1516 = vpop.f32.mrf.mxu0
        %1517 = vdwg.mxu0
        %v1518 = vadd.f32 %v1350, %v1480
        %v1519 = vadd.f32 %v1355, %v1485
        %v1520 = vadd.f32 %v1360, %v1490
        %v1521 = vadd.f32 %v1365, %v1495
        %v1522 = vadd.f32 %v1370, %v1500
        %v1523 = vadd.f32 %v1375, %v1505
        %v1524 = vadd.f32 %v1380, %v1510
        %v1525 = vadd.f32 %v1385, %v1515
        %v1526 = vld [vmem:[%s8] sm:$0x1]
        %v1528 = vlaneseq
        %v1529 = vshrl.u32 %v1528, 7
        %v1530 = vsub.s32 0, %v1529
        %v1531 = vrot.slane %v1526, %v1530
        %v1533 = vadd.f32 %v1518, %v1531
        %v1534 = vadd.f32 %v1519, %v1531
        %v1535 = vadd.f32 %v1520, %v1531
        %v1536 = vadd.f32 %v1521, %v1531
        %v1537 = vadd.f32 %v1522, %v1531
        %v1538 = vadd.f32 %v1523, %v1531
        %v1539 = vadd.f32 %v1524, %v1531
        %v1540 = vadd.f32 %v1525, %v1531
        %v1541 = vmax.f32 %v1533, 0.0
        %v1542 = vmax.f32 %v1534, 0.0
        %v1543 = vmax.f32 %v1535, 0.0
        %v1544 = vmax.f32 %v1536, 0.0
        %v1545 = vmax.f32 %v1537, 0.0
        %v1546 = vmax.f32 %v1538, 0.0
        %v1547 = vmax.f32 %v1539, 0.0
        %v1548 = vmax.f32 %v1540, 0.0
        %1549 = vadd.xlane.f32.xlu0 %v1541
        %v1550 = vpop.xlane.xlu0 %1549
        %1551 = vadd.xlane.f32.xlu0 %v1542
        %v1552 = vpop.xlane.xlu0 %1551
        %1553 = vadd.xlane.f32.xlu0 %v1543
        %v1554 = vpop.xlane.xlu0 %1553
        %1555 = vadd.xlane.f32.xlu0 %v1544
        %v1556 = vpop.xlane.xlu0 %1555
        %1557 = vadd.xlane.f32.xlu0 %v1545
        %v1558 = vpop.xlane.xlu0 %1557
        %1559 = vadd.xlane.f32.xlu0 %v1546
        %v1560 = vpop.xlane.xlu0 %1559
        %1561 = vadd.xlane.f32.xlu0 %v1547
        %v1562 = vpop.xlane.xlu0 %1561
        %1563 = vadd.xlane.f32.xlu0 %v1548
        %v1564 = vpop.xlane.xlu0 %1563
        %v1565 = vmul.f32 %v1550, 0.0078125
        %v1566 = vmul.f32 %v1552, 0.0078125
        %v1567 = vmul.f32 %v1554, 0.0078125
        %v1568 = vmul.f32 %v1556, 0.0078125
        %v1569 = vmul.f32 %v1558, 0.0078125
        %v1570 = vmul.f32 %v1560, 0.0078125
        %v1571 = vmul.f32 %v1562, 0.0078125
        %v1572 = vmul.f32 %v1564, 0.0078125
        %v1573 = vsub.f32 %v1541, %v1565
        %v1574 = vsub.f32 %v1542, %v1566
        %v1575 = vsub.f32 %v1543, %v1567
        %v1576 = vsub.f32 %v1544, %v1568
        %v1577 = vsub.f32 %v1545, %v1569
        %v1578 = vsub.f32 %v1546, %v1570
        %v1579 = vsub.f32 %v1547, %v1571
        %v1580 = vsub.f32 %v1548, %v1572
        %v1581 = vmul.f32 %v1573, %v1573
        %v1582 = vmul.f32 %v1574, %v1574
        %v1583 = vmul.f32 %v1575, %v1575
        %v1584 = vmul.f32 %v1576, %v1576
        %v1585 = vmul.f32 %v1577, %v1577
        %v1586 = vmul.f32 %v1578, %v1578
        %v1587 = vmul.f32 %v1579, %v1579
        %v1588 = vmul.f32 %v1580, %v1580
        %1589 = vadd.xlane.f32.xlu0 %v1581
        %v1590 = vpop.xlane.xlu0 %1589
        %1591 = vadd.xlane.f32.xlu0 %v1582
        %v1592 = vpop.xlane.xlu0 %1591
        %1593 = vadd.xlane.f32.xlu0 %v1583
        %v1594 = vpop.xlane.xlu0 %1593
        %1595 = vadd.xlane.f32.xlu0 %v1584
        %v1596 = vpop.xlane.xlu0 %1595
        %1597 = vadd.xlane.f32.xlu0 %v1585
        %v1598 = vpop.xlane.xlu0 %1597
        %1599 = vadd.xlane.f32.xlu0 %v1586
        %v1600 = vpop.xlane.xlu0 %1599
        %1601 = vadd.xlane.f32.xlu0 %v1587
        %v1602 = vpop.xlane.xlu0 %1601
        %1603 = vadd.xlane.f32.xlu0 %v1588
        %v1604 = vpop.xlane.xlu0 %1603
        %v1605 = vmul.f32 %v1590, 0.0078125
        %v1606 = vmul.f32 %v1592, 0.0078125
        %v1607 = vmul.f32 %v1594, 0.0078125
        %v1608 = vmul.f32 %v1596, 0.0078125
        %v1609 = vmul.f32 %v1598, 0.0078125
        %v1610 = vmul.f32 %v1600, 0.0078125
        %v1611 = vmul.f32 %v1602, 0.0078125
        %v1612 = vmul.f32 %v1604, 0.0078125
        %v1613 = vadd.f32 %v1605, 1e-12
        %v1614 = vadd.f32 %v1606, 1e-12
        %v1615 = vadd.f32 %v1607, 1e-12
        %v1616 = vadd.f32 %v1608, 1e-12
        %v1617 = vadd.f32 %v1609, 1e-12
        %v1618 = vadd.f32 %v1610, 1e-12
        %v1619 = vadd.f32 %v1611, 1e-12
        %v1620 = vadd.f32 %v1612, 1e-12
        %v1621 = vrsqrt.pop %v1613
        %v1622 = vrsqrt.pop %v1614
        %v1623 = vrsqrt.pop %v1615
        %v1624 = vrsqrt.pop %v1616
        %v1625 = vrsqrt.pop %v1617
        %v1626 = vrsqrt.pop %v1618
        %v1627 = vrsqrt.pop %v1619
        %v1628 = vrsqrt.pop %v1620
        %v1629 = vmul.f32 %v1573, %v1621
        %v1630 = vmul.f32 %v1574, %v1622
        %v1631 = vmul.f32 %v1575, %v1623
        %v1632 = vmul.f32 %v1576, %v1624
        %v1633 = vmul.f32 %v1577, %v1625
        %v1634 = vmul.f32 %v1578, %v1626
        %v1635 = vmul.f32 %v1579, %v1627
        %v1636 = vmul.f32 %v1580, %v1628
        %v1637 = vld [vmem:[%s9] sm:$0x1]
        %v1639 = vlaneseq
        %v1640 = vshrl.u32 %v1639, 7
        %v1641 = vsub.s32 0, %v1640
        %v1642 = vrot.slane %v1637, %v1641
        %v1644 = vmul.f32 %v1629, %v1642
        %v1645 = vmul.f32 %v1630, %v1642
        %v1646 = vmul.f32 %v1631, %v1642
        %v1647 = vmul.f32 %v1632, %v1642
        %v1648 = vmul.f32 %v1633, %v1642
        %v1649 = vmul.f32 %v1634, %v1642
        %v1650 = vmul.f32 %v1635, %v1642
        %v1651 = vmul.f32 %v1636, %v1642
        %v1652 = vld [vmem:[%s10] sm:$0x1]
        %v1654 = vlaneseq
        %v1655 = vshrl.u32 %v1654, 7
        %v1656 = vsub.s32 0, %v1655
        %v1657 = vrot.slane %v1652, %v1656
        %v1659 = vadd.f32 %v1644, %v1657
        %v1660 = vadd.f32 %v1645, %v1657
        %v1661 = vadd.f32 %v1646, %v1657
        %v1662 = vadd.f32 %v1647, %v1657
        %v1663 = vadd.f32 %v1648, %v1657
        %v1664 = vadd.f32 %v1649, %v1657
        %v1665 = vadd.f32 %v1650, %v1657
        %v1666 = vadd.f32 %v1651, %v1657
        %v1667 = vmul.f32 %v1659, %v515
        %v1668 = vmul.f32 %v1660, %v520
        %v1669 = vmul.f32 %v1661, %v525
        %v1670 = vmul.f32 %v1662, %v530
        %v1671 = vmul.f32 %v1663, %v535
        %v1672 = vmul.f32 %v1664, %v540
        %v1673 = vmul.f32 %v1665, %v545
        %v1674 = vmul.f32 %v1666, %v550
        %v1675 = vld [vmem:[%s11] sm:$0x1]
        %v1676 = vld [vmem:[#allocation4] sm:$0x1]
        %1678 = vset.pattern.permute.xlu0 0
        %1679 = vperm.xlu0 %1678, %v1676
        %v1680 = vpop.permute.xlu0 %1679
        %v1682 = vlaneseq
        %v1683 = vshrl.u32 %v1682, 7
        %v1684 = vsub.s32 0, %v1683
        %v1685 = vrot.slane %v1680, %v1684
        %1686 = vmatprep.subr.mxu0 0.0
        %1687 = vmatpush1.xpose.msra.mxu0 0.0
        %1688 = vmatprep.subr.mxu0 0.0
        %1689 = vmatpush1.xpose.msra.mxu0 0.0
        %1690 = vmatprep.subr.mxu0 0.0
        %1691 = vmatpush1.xpose.msra.mxu0 0.0
        %1692 = vmatprep.subr.mxu0 0.0
        %1693 = vmatpush1.xpose.msra.mxu0 0.0
        %1694 = vmatprep.subr.mxu0 0.0
        %1695 = vmatpush1.xpose.msra.mxu0 0.0
        %1696 = vmatprep.subr.mxu0 0.0
        %1697 = vmatpush1.xpose.msra.mxu0 0.0
        %1698 = vmatprep.subr.mxu0 0.0
        %1699 = vmatpush1.xpose.msra.mxu0 0.0
        %1700 = vmatprep.subr.mxu0 0.0
        %1701 = vmatpush1.xpose.msra.mxu0 0.0
        %1702 = vmatprep.subr.mxu0 0.0
        %1703 = vmatpush1.xpose.msra.mxu0 %v1674
        %1704 = vmatprep.subr.mxu0 0.0
        %1705 = vmatpush1.xpose.msra.mxu0 %v1673
        %1706 = vmatprep.subr.mxu0 0.0
        %1707 = vmatpush1.xpose.msra.mxu0 %v1672
        %1708 = vmatprep.subr.mxu0 0.0
        %1709 = vmatpush1.xpose.msra.mxu0 %v1671
        %1710 = vmatprep.subr.mxu0 0.0
        %1711 = vmatpush1.xpose.msra.mxu0 %v1670
        %1712 = vmatprep.subr.mxu0 0.0
        %1713 = vmatpush1.xpose.msra.mxu0 %v1669
        %1714 = vmatprep.subr.mxu0 0.0
        %1715 = vmatpush1.xpose.msra.mxu0 %v1668
        %1716 = vmatprep.subr.mxu0 0.0
        %1717 = vmatpush1.xpose.msra.mxu0 %v1667
        %1718 = vmatprep.subr.mxu0 0.0
        %1719 = vmatpush2.xpose.msra.mxu0 0.0
        %1720 = vmatprep.subr.mxu0 0.0
        %1721 = vmatpush2.xpose.msra.mxu0 0.0
        %1722 = vmatprep.subr.mxu0 0.0
        %1723 = vmatpush2.xpose.msra.mxu0 0.0
        %1724 = vmatprep.subr.mxu0 0.0
        %1725 = vmatpush2.xpose.msra.mxu0 0.0
        %1726 = vmatprep.subr.mxu0 0.0
        %1727 = vmatpush2.xpose.msra.mxu0 0.0
        %1728 = vmatprep.subr.mxu0 0.0
        %1729 = vmatpush2.xpose.msra.mxu0 0.0
        %1730 = vmatprep.subr.mxu0 0.0
        %1731 = vmatpush2.xpose.msra.mxu0 0.0
        %1732 = vmatprep.subr.mxu0 0.0
        %1733 = vmatpush2.xpose.msra.mxu0 0.0
        %1734 = vmatprep.subr.mxu0 0.0
        %1735 = vmatpush2.xpose.msra.mxu0 0.0
        %1736 = vmatprep.subr.mxu0 0.0
        %1737 = vmatpush2.xpose.msra.mxu0 0.0
        %1738 = vmatprep.subr.mxu0 0.0
        %1739 = vmatpush2.xpose.msra.mxu0 0.0
        %1740 = vmatprep.subr.mxu0 0.0
        %1741 = vmatpush2.xpose.msra.mxu0 0.0
        %1742 = vmatprep.subr.mxu0 0.0
        %1743 = vmatpush2.xpose.msra.mxu0 0.0
        %1744 = vmatprep.subr.mxu0 0.0
        %1745 = vmatpush2.xpose.msra.mxu0 0.0
        %1746 = vmatprep.subr.mxu0 0.0
        %1747 = vmatpush2.xpose.msra.mxu0 0.0
        %1748 = vmatprep.subr.mxu0 0.0
        %1749 = vmatpush2.xpose.msra.mxu0 0.0
        %1750 = vmatprep.mubr.f32.mxu0 0.0
        %1751 = vmatmul.mubr.f32.gmra.mxu0 %v1675
        %v1752 = vpop.f32.mrf.mxu0
        %v1753 = vadd.f32 %v1685, %v1752
        %v1754 = vpop.f32.mrf.mxu0
        %1755 = vdwg.mxu0
        %v1756 = vmul.f32 %v1753, %v552
        %vm1757 = vcmask 516096
        %1758 = vst.msk [vmem:[%s490] sm:$0x1] %vm1757, %v1756
        %s1759 = sand.u32 %s327, 1
        %s1760 = scalar_lea.sflag [#allocation7], %s1759
        %s1761 = sand.u32 %s327, 1
        %s1762 = scalar_lea.vmem [#allocation10], %s1761
        // Predicated region
        $region81: #{duration_predictor_forward.1} parent=71 // pred_check
          %p1763 = pneg %p337
        $region82: #{duration_predictor_forward.1} parent=71 // pred_check_branch
          %1765 = sbr.rel (%p1763) target = $region84
        $region83: #{duration_predictor_forward.1} parent=71 // pred_region
          %s1767 = ssub.s32 16, 16
          %1768 = vsyncadd %s1760, %s1767
          %s1769 = smul.addr %s31, 16
          %s1770 = scalar_lea.hbm %s13, %s1769
          %s1772 = sshll.u32 %s1762, 4
          %s1773 = int_to_ptr.vmem [resolvable:$true] %s1772
          %1775 = dma.vmem_to_hbm [thread:$0]  %s1773, 16, %s1770, %s1760
        $region84: #{duration_predictor_forward.1} parent=71 // pred_fallthru
          _
      $region72: #{duration_predictor_forward.1} parent=5 // pred_fallthru
        _
      %p1776 = scmp.le.s32.totalorder 2, %s26
      // Predicated region
      $region85: #{duration_predictor_forward.1} parent=5 // pred_check
        %p1777 = pneg %p1776
      $region86: #{duration_predictor_forward.1} parent=5 // pred_check_branch
        %1779 = sbr.rel (%p1777) target = $region88
      $region87: #{duration_predictor_forward.1} parent=5 // pred_region
        %s1780 = ssub.s32 %s26, 2
        // Predicated region
        $region89: #{duration_predictor_forward.1} parent=87 // pred_check
          %p1781 = pneg %p343
        $region90: #{duration_predictor_forward.1} parent=87 // pred_check_branch
          %1783 = sbr.rel (%p1781) target = $region92
        $region91: #{duration_predictor_forward.1} parent=87 // pred_region
          %s1784 = sand.u32 %s328, 1
          %s1785 = scalar_lea.sflag [#allocation7], %s1784
          %s1786 = sand.u32 %s328, 1
          %s1787 = scalar_lea.vmem [#allocation10], %s1786
          %1788 = dma.done %s1785, 16
        $region92: #{duration_predictor_forward.1} parent=87 // pred_fallthru
          _
      $region88: #{duration_predictor_forward.1} parent=5 // pred_fallthru
        _
    $region6: #{duration_predictor_forward.1} parent=1 // loop_footer
      %s30 = sadd.s32 1, %s26
    $region7: #{duration_predictor_forward.1} parent=1 // loop_footer_branch
      %25 = sbr.rel target = $region3
    $region8: #{duration_predictor_forward.1} parent=1 // loop_exit
      _
    %1789 = vsyncpa [#allocation6], 1
    %s1790 = scalar_lea.sflag [#allocation6], 1
    %1791 = vsyncpa %s1790, 1
    %1792 = vsyncpa [#allocation9], 1
    %1793 = vsyncpa [#allocation7], 1
    %s1794 = scalar_lea.sflag [#allocation7], 1
    %1795 = vsyncpa %s1794, 1

</llo_original>
